<compile_context>
chip_gen: v7x
topology: tpu7x:2x2x1
jax: 0.10.0
libtpu: 0.0.40
codegen_flags: <defaults>
</compile_context>

<pallas_src>
import math
from functools import partial

import jax
import jax.numpy as jnp
from jax import lax
from jax.experimental import pallas as pl
from jax.experimental.pallas import tpu as pltpu


def _round_up(n, m):
    return ((n + m - 1) // m) * m


def _vmem_limit_bytes():
    # Generation-aware scoped-VMEM budget: ~7/8 of physical per-core VMEM
    # leaves headroom for compiler-internal scratch (v5e/v6e: 112 of 128 MiB,
    # v7x: 56 of 64 MiB).
    try:
        cap = int(pltpu.get_tpu_info().vmem_capacity_bytes)
    except Exception:
        cap = 64 * 1024 * 1024      # conservative fallback (v7x per-TC VMEM)
    return cap * 7 // 8


def _sigmoid(x):
    # One EUP pass (tanh) instead of exp + reciprocal per gate.
    return 0.5 * jnp.tanh(0.5 * x) + 0.5


def _lstm_kernel(pg_ref, whh_hbm,               # in: pre-gates chunk, W_hh^T (HBM)
                 hs_ref, cs_ref,                # out: hidden / cell chunks
                 w_vmem, w_sem, h_sc, c_sc):    # scratch
    # program_id(0) = batch tile ("parallel"), program_id(1) = time chunk ("arbitrary").
    @pl.when(pl.program_id(1) == 0)
    def _():
        # Single-buffered weight residency: DMA W_hh^T into VMEM once per
        # batch tile (it is grid-invariant along the time axis).
        cp = pltpu.make_async_copy(whh_hbm, w_vmem, w_sem)
        cp.start()
        cp.wait()
        h_sc[...] = jnp.zeros_like(h_sc)
        c_sc[...] = jnp.zeros_like(c_sc)

    tt = pg_ref.shape[0]        # timesteps in this chunk (static)
    tb = h_sc.shape[0]          # batch tile
    hp = c_sc.shape[-1]         # padded hidden size (lane multiple)
    w = w_vmem[...]             # (Hp, 4Hp), hoisted out of the recurrence

    def step(i, carry):
        h, c = carry            # h: matmul dtype, c: f32
        # Only h @ W_hh^T sits on the serial critical path; the x projection
        # + bias were precomputed (gate-stride laid out) outside the kernel.
        gates = pg_ref[i].astype(jnp.float32) + jnp.dot(
            h, w, preferred_element_type=jnp.float32)
        i_g = _sigmoid(gates[:, 0 * hp:1 * hp])     # lane-aligned slices
        f_g = _sigmoid(gates[:, 1 * hp:2 * hp])
        g_g = jnp.tanh(gates[:, 2 * hp:3 * hp])
        o_g = _sigmoid(gates[:, 3 * hp:4 * hp])
        c = f_g * c + i_g * g_g
        h_new = o_g * jnp.tanh(c)                   # f32
        hs_ref[i] = h_new.astype(hs_ref.dtype)
        cs_ref[i] = c.astype(cs_ref.dtype)
        return h_new.astype(h_sc.dtype), c

    h, c = h_sc[...], c_sc[...]
    # Fully unroll only while the per-step gate tile is small; otherwise a
    # partially-unrolled fori_loop bounds vreg pressure while keeping LLO
    # scheduling visibility.
    if tb * 4 * hp * 4 <= 64 * 1024:
        for i in range(tt):
            h, c = step(i, (h, c))
    else:
        h, c = lax.fori_loop(0, tt, step, (h, c), unroll=2)

    h_sc[...] = h
    c_sc[...] = c


@partial(jax.jit,
         static_argnames=("time_chunk", "batch_tile", "param_dtype", "out_dtype"))
def lstm_pallas(x, w_ih, w_hh, b_ih, b_hh, *,
                time_chunk=16, batch_tile=None,
                param_dtype=jnp.bfloat16, out_dtype=jnp.float32):
    """Single-layer LSTM over x:(T,B,I). PyTorch gate order (i,f,g,o), zero init state."""
    T, B, I = x.shape
    four_h, H = w_hh.shape
    assert four_h == 4 * H

    # Batch tile: as large as B allows (up to 128 MXU rows) -- the per-step
    # recurrent matmul is (batch_tile, Hp) @ (Hp, 4Hp), so M is the main MXU
    # lever.  On v7x prefer a tile keeping Bp/batch_tile >= 2 so the "parallel"
    # batch axis can split across both TensorCores.
    if batch_tile is None:
        batch_tile = min(128, _round_up(B, 8))
    assert batch_tile % 8 == 0, "batch tile must be a sublane multiple"

    Hp = _round_up(H, 128)                 # lane multiple
    Bp = _round_up(B, batch_tile)
    TT = min(time_chunk, T)
    Tp = _round_up(T, TT)

    # ---- Gate re-layout on the *weights* (O(4Hp*I), not O(T*B*4Hp)): gate g
    #      lives at rows [g*Hp, g*Hp+H).  Padded lanes get zero pre-gates and
    #      zero recurrent weights, so padded h/c stay exactly 0 and never
    #      contaminate real outputs (relies on the zero padding below).
    wih32 = jnp.asarray(w_ih, jnp.float32)
    whh32 = jnp.asarray(w_hh, jnp.float32)
    bias32 = jnp.asarray(b_ih, jnp.float32) + jnp.asarray(b_hh, jnp.float32)

    wih_p = jnp.zeros((4 * Hp, I), jnp.float32)
    bias_p = jnp.zeros((4 * Hp,), jnp.float32)
    whh_p = jnp.zeros((4 * Hp, Hp), jnp.float32)
    for g in range(4):
        wih_p = wih_p.at[g * Hp:g * Hp + H, :].set(wih32[g * H:(g + 1) * H, :])
        bias_p = bias_p.at[g * Hp:g * Hp + H].set(bias32[g * H:(g + 1) * H])
        whh_p = whh_p.at[g * Hp:g * Hp + H, :H].set(whh32[g * H:(g + 1) * H, :])
    whh_t = whh_p.T.astype(param_dtype)                   # (Hp, 4Hp)

    # ---- Hoisted input projection: one big fully-parallel matmul over all
    #      Tp*Bp rows in the MXU-native dtype with f32 accumulation, written
    #      directly in the padded gate-stride layout (no post-matmul scatter).
    #      Pre-gates are stored in param_dtype (bf16 halves HBM/VMEM traffic).
    x_p = jnp.zeros((Tp, Bp, I), param_dtype).at[:T, :B, :].set(
        jnp.asarray(x, param_dtype))
    pre_gates = jnp.einsum("tbi,gi->tbg", x_p, wih_p.astype(param_dtype),
                           preferred_element_type=jnp.float32) + bias_p
    pgp = pre_gates.astype(param_dtype)

    n_b = Bp // batch_tile
    n_t = Tp // TT

    hs_p, cs_p = pl.pallas_call(
        _lstm_kernel,
        out_shape=(jax.ShapeDtypeStruct((Tp, Bp, Hp), out_dtype),
                   jax.ShapeDtypeStruct((Tp, Bp, Hp), out_dtype)),
        grid_spec=pltpu.PrefetchScalarGridSpec(
            num_scalar_prefetch=0,
            grid=(n_b, n_t),
            in_specs=[
                # pre-gates chunk: (TT, batch_tile, 4Hp)
                pl.BlockSpec((TT, batch_tile, 4 * Hp), lambda b, t: (t, b, 0)),
                # W_hh^T stays in HBM; the kernel DMAs it once per batch tile
                # into a single VMEM scratch buffer (no double-buffering).
                pl.BlockSpec(memory_space=pl.ANY),
            ],
            out_specs=[
                pl.BlockSpec((TT, batch_tile, Hp), lambda b, t: (t, b, 0)),
                pl.BlockSpec((TT, batch_tile, Hp), lambda b, t: (t, b, 0)),
            ],
            scratch_shapes=[
                pltpu.VMEM((Hp, 4 * Hp), param_dtype),      # resident W_hh^T
                pltpu.SemaphoreType.DMA(()),                # its DMA semaphore
                pltpu.VMEM((batch_tile, Hp), param_dtype),  # h carry (matmul dtype)
                pltpu.VMEM((batch_tile, Hp), jnp.float32),  # c carry (f32)
            ],
        ),
        compiler_params=pltpu.CompilerParams(
            # batch tiles are independent recurrences (megacore can split
            # them); time chunks must stay sequential.
            dimension_semantics=("parallel", "arbitrary"),
            vmem_limit_bytes=_vmem_limit_bytes(),
        ),
    )(pgp, whh_t)

    hs = hs_p[:T, :B, :H]
    cs = cs_p[:T, :B, :H]
    # Mirrors my_LSTM.forward: (hidden_state_list, (hidden_state_list, cell_state_list))
    return hs, (hs, cs)


def lstm_reference(x, w_ih, w_hh, b_ih, b_hh):
    """Pure-JAX reference (standard PyTorch-style single-layer LSTM, zero init)."""
    H = w_hh.shape[1]
    bias = b_ih + b_hh
    B = x.shape[1]

    def step(carry, x_t):
        h, c = carry
        gates = x_t @ w_ih.T + h @ w_hh.T + bias
        i_g = jax.nn.sigmoid(gates[:, 0 * H:1 * H])
        f_g = jax.nn.sigmoid(gates[:, 1 * H:2 * H])
        g_g = jnp.tanh(gates[:, 2 * H:3 * H])
        o_g = jax.nn.sigmoid(gates[:, 3 * H:4 * H])
        c_new = f_g * c + i_g * g_g
        h_new = o_g * jnp.tanh(c_new)
        return (h_new, c_new), (h_new, c_new)

    h0 = jnp.zeros((B, H), jnp.float32)
    c0 = jnp.zeros((B, H), jnp.float32)
    _, (hs, cs) = lax.scan(step, (h0, c0), x)
    return hs, cs


if __name__ == "__main__":
    T, B, input_size, hidden_size = 8, 2, 4, 32
    num_layers = 1  # TODO(synk): module accepts num_layers but never stores/uses it; single layer implemented.

    key = jax.random.PRNGKey(0)
    k_x, k_wih, k_whh, k_bih, k_bhh = jax.random.split(key, 5)

    stdv = 1.0 / math.sqrt(hidden_size)   # matches reset_parameters()
    x = jax.random.normal(k_x, (T, B, input_size), jnp.float32)
    w_ih = jax.random.uniform(k_wih, (4 * hidden_size, input_size),
                              jnp.float32, -stdv, stdv)
    w_hh = jax.random.uniform(k_whh, (4 * hidden_size, hidden_size),
                              jnp.float32, -stdv, stdv)
    b_ih = jax.random.uniform(k_bih, (4 * hidden_size,), jnp.float32, -stdv, stdv)
    b_hh = jax.random.uniform(k_bhh, (4 * hidden_size,), jnp.float32, -stdv, stdv)

    hs_ref, cs_ref = lstm_reference(x, w_ih, w_hh, b_ih, b_hh)

    # f32 path: tight check against the pure-JAX reference.
    hs, (hs2, cs) = jax.block_until_ready(
        lstm_pallas(x, w_ih, w_hh, b_ih, b_hh, param_dtype=jnp.float32))
    assert hs.shape == (T, B, hidden_size) and cs.shape == (T, B, hidden_size)
    assert jnp.allclose(hs, hs_ref, atol=1e-4, rtol=1e-4), "hidden mismatch (f32)"
    assert jnp.allclose(cs, cs_ref, atol=1e-4, rtol=1e-4), "cell mismatch (f32)"

    # bf16 fast path (bf16 projection, pre-gates, W_hh, h carry; f32 accumulation).
    hs_b, (_, cs_b) = jax.block_until_ready(
        lstm_pallas(x, w_ih, w_hh, b_ih, b_hh, param_dtype=jnp.bfloat16))
    assert jnp.allclose(hs_b, hs_ref, atol=5e-2, rtol=0.0), "hidden mismatch (bf16)"
    assert jnp.allclose(cs_b, cs_ref, atol=5e-2, rtol=0.0), "cell mismatch (bf16)"

    print("KERNEL_OK")
</pallas_src>

<mosaic_0001>
module attributes {stable_mosaic.version = 11 : i64} {
  func.func @_lstm_kernel(%arg0: i32, %arg1: i32, %arg2: memref<8x8x512xf32, #tpu.memory_space<vmem>>, %arg3: memref<128x512xf32, #tpu.memory_space<any>>, %arg4: memref<8x8x128xf32, #tpu.memory_space<vmem>>, %arg5: memref<8x8x128xf32, #tpu.memory_space<vmem>>, %arg6: memref<128x512xf32, #tpu.memory_space<vmem>>, %arg7: memref<!tpu.dma_semaphore, #tpu.memory_space<semaphore_mem>>, %arg8: memref<8x128xf32, #tpu.memory_space<vmem>>, %arg9: memref<8x128xf32, #tpu.memory_space<vmem>>) attributes {dimension_semantics = [#tpu.dimension_semantics<parallel>, #tpu.dimension_semantics<arbitrary>], iteration_bounds = array<i64: 1, 1>, scalar_prefetch = 0 : i64, scratch_operands = 4 : i64, tpu.core_type = #tpu.core_type<tc>, window_params = [{transform_indices = @transform_0, window_bounds = array<i64: 8, 8, 512>}, {}, {transform_indices = @transform_2, window_bounds = array<i64: 8, 8, 128>}, {transform_indices = @transform_3, window_bounds = array<i64: 8, 8, 128>}]} {
    %c0_i32 = arith.constant 0 : i32
    %0 = arith.cmpi eq, %arg1, %c0_i32 : i32
    %1 = arith.extui %0 : i1 to i32
    %c0_i32_0 = arith.constant 0 : i32
    %2 = arith.cmpi ne, %1, %c0_i32_0 : i32
    scf.if %2 {
      tpu.enqueue_dma source(%arg3 : memref<128x512xf32, #tpu.memory_space<any>>) target(%arg6 : memref<128x512xf32, #tpu.memory_space<vmem>>) target_semaphore(%arg7 : memref<!tpu.dma_semaphore, #tpu.memory_space<semaphore_mem>>)
      tpu.wait_dma2 semaphore(%arg7 : memref<!tpu.dma_semaphore, #tpu.memory_space<semaphore_mem>>) src(%arg3 : memref<128x512xf32, #tpu.memory_space<any>>) dst(%arg6 : memref<128x512xf32, #tpu.memory_space<vmem>>)
      %cst_154 = arith.constant 0.000000e+00 : f32
      %336 = vector.broadcast %cst_154 : f32 to vector<8x128xf32>
      %c0_155 = arith.constant 0 : index
      %c0_156 = arith.constant 0 : index
      %337 = vector.load %arg8[%c0_155, %c0_156] : memref<8x128xf32, #tpu.memory_space<vmem>>, vector<8x128xf32>
      tpu.vector_store %arg8[%c0_155, %c0_156], %336 {strides = array<i32>} : memref<8x128xf32, #tpu.memory_space<vmem>>, vector<8x128xf32>,
      %cst_157 = arith.constant 0.000000e+00 : f32
      %338 = vector.broadcast %cst_157 : f32 to vector<8x128xf32>
      %c0_158 = arith.constant 0 : index
      %c0_159 = arith.constant 0 : index
      %339 = vector.load %arg9[%c0_158, %c0_159] : memref<8x128xf32, #tpu.memory_space<vmem>>, vector<8x128xf32>
      tpu.vector_store %arg9[%c0_158, %c0_159], %338 {strides = array<i32>} : memref<8x128xf32, #tpu.memory_space<vmem>>, vector<8x128xf32>,
    } else {
    }
    %c0 = arith.constant 0 : index
    %c0_1 = arith.constant 0 : index
    %3 = vector.load %arg6[%c0, %c0_1] : memref<128x512xf32, #tpu.memory_space<vmem>>, vector<128x512xf32>
    %c0_2 = arith.constant 0 : index
    %c0_3 = arith.constant 0 : index
    %4 = vector.load %arg8[%c0_2, %c0_3] : memref<8x128xf32, #tpu.memory_space<vmem>>, vector<8x128xf32>
    %c0_4 = arith.constant 0 : index
    %c0_5 = arith.constant 0 : index
    %5 = vector.load %arg9[%c0_4, %c0_5] : memref<8x128xf32, #tpu.memory_space<vmem>>, vector<8x128xf32>
    %c0_6 = arith.constant 0 : index
    %c0_7 = arith.constant 0 : index
    %c0_8 = arith.constant 0 : index
    %6 = vector.load %arg2[%c0_6, %c0_7, %c0_8] : memref<8x8x512xf32, #tpu.memory_space<vmem>>, vector<1x8x512xf32>
    %7 = vector.shape_cast %6 : vector<1x8x512xf32> to vector<8x512xf32>
    %cst = arith.constant dense<0.000000e+00> : vector<8x512xf32>
    %8 = tpu.matmul %4, %3, %cst {dimension_numbers = #tpu.dot_dimension_numbers<[1], [0], [0], [1], [0, 0, 1, 1], [], []>} : vector<8x128xf32>, vector<128x512xf32>, vector<8x512xf32> -> vector<8x512xf32>
    %9 = arith.addf %7, %8 : vector<8x512xf32>
    %10 = vector.extract_strided_slice %9 {offsets = [0, 0], sizes = [8, 128], strides = [1, 1]} : vector<8x512xf32> to vector<8x128xf32>
    %cst_9 = arith.constant 5.000000e-01 : f32
    %11 = vector.broadcast %cst_9 : f32 to vector<8x128xf32>
    %12 = arith.mulf %11, %10 : vector<8x128xf32>
    %13 = math.tanh %12 : vector<8x128xf32>
    %cst_10 = arith.constant 5.000000e-01 : f32
    %14 = vector.broadcast %cst_10 : f32 to vector<8x128xf32>
    %15 = arith.mulf %14, %13 : vector<8x128xf32>
    %cst_11 = arith.constant 5.000000e-01 : f32
    %16 = vector.broadcast %cst_11 : f32 to vector<8x128xf32>
    %17 = arith.addf %15, %16 : vector<8x128xf32>
    %18 = vector.extract_strided_slice %9 {offsets = [0, 128], sizes = [8, 128], strides = [1, 1]} : vector<8x512xf32> to vector<8x128xf32>
    %cst_12 = arith.constant 5.000000e-01 : f32
    %19 = vector.broadcast %cst_12 : f32 to vector<8x128xf32>
    %20 = arith.mulf %19, %18 : vector<8x128xf32>
    %21 = math.tanh %20 : vector<8x128xf32>
    %cst_13 = arith.constant 5.000000e-01 : f32
    %22 = vector.broadcast %cst_13 : f32 to vector<8x128xf32>
    %23 = arith.mulf %22, %21 : vector<8x128xf32>
    %cst_14 = arith.constant 5.000000e-01 : f32
    %24 = vector.broadcast %cst_14 : f32 to vector<8x128xf32>
    %25 = arith.addf %23, %24 : vector<8x128xf32>
    %26 = vector.extract_strided_slice %9 {offsets = [0, 256], sizes = [8, 128], strides = [1, 1]} : vector<8x512xf32> to vector<8x128xf32>
    %27 = math.tanh %26 : vector<8x128xf32>
    %28 = vector.extract_strided_slice %9 {offsets = [0, 384], sizes = [8, 128], strides = [1, 1]} : vector<8x512xf32> to vector<8x128xf32>
    %cst_15 = arith.constant 5.000000e-01 : f32
    %29 = vector.broadcast %cst_15 : f32 to vector<8x128xf32>
    %30 = arith.mulf %29, %28 : vector<8x128xf32>
    %31 = math.tanh %30 : vector<8x128xf32>
    %cst_16 = arith.constant 5.000000e-01 : f32
    %32 = vector.broadcast %cst_16 : f32 to vector<8x128xf32>
    %33 = arith.mulf %32, %31 : vector<8x128xf32>
    %cst_17 = arith.constant 5.000000e-01 : f32
    %34 = vector.broadcast %cst_17 : f32 to vector<8x128xf32>
    %35 = arith.addf %33, %34 : vector<8x128xf32>
    %36 = arith.mulf %25, %5 : vector<8x128xf32>
    %37 = arith.mulf %17, %27 : vector<8x128xf32>
    %38 = arith.addf %36, %37 : vector<8x128xf32>
    %39 = math.tanh %38 : vector<8x128xf32>
    %40 = arith.mulf %35, %39 : vector<8x128xf32>
    %c0_18 = arith.constant 0 : index
    %c0_19 = arith.constant 0 : index
    %c0_20 = arith.constant 0 : index
    %41 = vector.load %arg4[%c0_18, %c0_19, %c0_20] : memref<8x8x128xf32, #tpu.memory_space<vmem>>, vector<1x8x128xf32>
    %42 = vector.shape_cast %41 : vector<1x8x128xf32> to vector<8x128xf32>
    %43 = vector.shape_cast %40 : vector<8x128xf32> to vector<1x8x128xf32>
    tpu.vector_store %arg4[%c0_18, %c0_19, %c0_20], %43 {strides = array<i32>} : memref<8x8x128xf32, #tpu.memory_space<vmem>>, vector<1x8x128xf32>,
    %c0_21 = arith.constant 0 : index
    %c0_22 = arith.constant 0 : index
    %c0_23 = arith.constant 0 : index
    %44 = vector.load %arg5[%c0_21, %c0_22, %c0_23] : memref<8x8x128xf32, #tpu.memory_space<vmem>>, vector<1x8x128xf32>
    %45 = vector.shape_cast %44 : vector<1x8x128xf32> to vector<8x128xf32>
    %46 = vector.shape_cast %38 : vector<8x128xf32> to vector<1x8x128xf32>
    tpu.vector_store %arg5[%c0_21, %c0_22, %c0_23], %46 {strides = array<i32>} : memref<8x8x128xf32, #tpu.memory_space<vmem>>, vector<1x8x128xf32>,
    %c1 = arith.constant 1 : index
    %c0_24 = arith.constant 0 : index
    %c0_25 = arith.constant 0 : index
    %47 = vector.load %arg2[%c1, %c0_24, %c0_25] : memref<8x8x512xf32, #tpu.memory_space<vmem>>, vector<1x8x512xf32>
    %48 = vector.shape_cast %47 : vector<1x8x512xf32> to vector<8x512xf32>
    %cst_26 = arith.constant dense<0.000000e+00> : vector<8x512xf32>
    %49 = tpu.matmul %40, %3, %cst_26 {dimension_numbers = #tpu.dot_dimension_numbers<[1], [0], [0], [1], [0, 0, 1, 1], [], []>} : vector<8x128xf32>, vector<128x512xf32>, vector<8x512xf32> -> vector<8x512xf32>
    %50 = arith.addf %48, %49 : vector<8x512xf32>
    %51 = vector.extract_strided_slice %50 {offsets = [0, 0], sizes = [8, 128], strides = [1, 1]} : vector<8x512xf32> to vector<8x128xf32>
    %cst_27 = arith.constant 5.000000e-01 : f32
    %52 = vector.broadcast %cst_27 : f32 to vector<8x128xf32>
    %53 = arith.mulf %52, %51 : vector<8x128xf32>
    %54 = math.tanh %53 : vector<8x128xf32>
    %cst_28 = arith.constant 5.000000e-01 : f32
    %55 = vector.broadcast %cst_28 : f32 to vector<8x128xf32>
    %56 = arith.mulf %55, %54 : vector<8x128xf32>
    %cst_29 = arith.constant 5.000000e-01 : f32
    %57 = vector.broadcast %cst_29 : f32 to vector<8x128xf32>
    %58 = arith.addf %56, %57 : vector<8x128xf32>
    %59 = vector.extract_strided_slice %50 {offsets = [0, 128], sizes = [8, 128], strides = [1, 1]} : vector<8x512xf32> to vector<8x128xf32>
    %cst_30 = arith.constant 5.000000e-01 : f32
    %60 = vector.broadcast %cst_30 : f32 to vector<8x128xf32>
    %61 = arith.mulf %60, %59 : vector<8x128xf32>
    %62 = math.tanh %61 : vector<8x128xf32>
    %cst_31 = arith.constant 5.000000e-01 : f32
    %63 = vector.broadcast %cst_31 : f32 to vector<8x128xf32>
    %64 = arith.mulf %63, %62 : vector<8x128xf32>
    %cst_32 = arith.constant 5.000000e-01 : f32
    %65 = vector.broadcast %cst_32 : f32 to vector<8x128xf32>
    %66 = arith.addf %64, %65 : vector<8x128xf32>
    %67 = vector.extract_strided_slice %50 {offsets = [0, 256], sizes = [8, 128], strides = [1, 1]} : vector<8x512xf32> to vector<8x128xf32>
    %68 = math.tanh %67 : vector<8x128xf32>
    %69 = vector.extract_strided_slice %50 {offsets = [0, 384], sizes = [8, 128], strides = [1, 1]} : vector<8x512xf32> to vector<8x128xf32>
    %cst_33 = arith.constant 5.000000e-01 : f32
    %70 = vector.broadcast %cst_33 : f32 to vector<8x128xf32>
    %71 = arith.mulf %70, %69 : vector<8x128xf32>
    %72 = math.tanh %71 : vector<8x128xf32>
    %cst_34 = arith.constant 5.000000e-01 : f32
    %73 = vector.broadcast %cst_34 : f32 to vector<8x128xf32>
    %74 = arith.mulf %73, %72 : vector<8x128xf32>
    %cst_35 = arith.constant 5.000000e-01 : f32
    %75 = vector.broadcast %cst_35 : f32 to vector<8x128xf32>
    %76 = arith.addf %74, %75 : vector<8x128xf32>
    %77 = arith.mulf %66, %38 : vector<8x128xf32>
    %78 = arith.mulf %58, %68 : vector<8x128xf32>
    %79 = arith.addf %77, %78 : vector<8x128xf32>
    %80 = math.tanh %79 : vector<8x128xf32>
    %81 = arith.mulf %76, %80 : vector<8x128xf32>
    %c1_36 = arith.constant 1 : index
    %c0_37 = arith.constant 0 : index
    %c0_38 = arith.constant 0 : index
    %82 = vector.load %arg4[%c1_36, %c0_37, %c0_38] : memref<8x8x128xf32, #tpu.memory_space<vmem>>, vector<1x8x128xf32>
    %83 = vector.shape_cast %82 : vector<1x8x128xf32> to vector<8x128xf32>
    %84 = vector.shape_cast %81 : vector<8x128xf32> to vector<1x8x128xf32>
    tpu.vector_store %arg4[%c1_36, %c0_37, %c0_38], %84 {strides = array<i32>} : memref<8x8x128xf32, #tpu.memory_space<vmem>>, vector<1x8x128xf32>,
    %c1_39 = arith.constant 1 : index
    %c0_40 = arith.constant 0 : index
    %c0_41 = arith.constant 0 : index
    %85 = vector.load %arg5[%c1_39, %c0_40, %c0_41] : memref<8x8x128xf32, #tpu.memory_space<vmem>>, vector<1x8x128xf32>
    %86 = vector.shape_cast %85 : vector<1x8x128xf32> to vector<8x128xf32>
    %87 = vector.shape_cast %79 : vector<8x128xf32> to vector<1x8x128xf32>
    tpu.vector_store %arg5[%c1_39, %c0_40, %c0_41], %87 {strides = array<i32>} : memref<8x8x128xf32, #tpu.memory_space<vmem>>, vector<1x8x128xf32>,
    %c2 = arith.constant 2 : index
    %c0_42 = arith.constant 0 : index
    %c0_43 = arith.constant 0 : index
    %88 = vector.load %arg2[%c2, %c0_42, %c0_43] : memref<8x8x512xf32, #tpu.memory_space<vmem>>, vector<1x8x512xf32>
    %89 = vector.shape_cast %88 : vector<1x8x512xf32> to vector<8x512xf32>
    %cst_44 = arith.constant dense<0.000000e+00> : vector<8x512xf32>
    %90 = tpu.matmul %81, %3, %cst_44 {dimension_numbers = #tpu.dot_dimension_numbers<[1], [0], [0], [1], [0, 0, 1, 1], [], []>} : vector<8x128xf32>, vector<128x512xf32>, vector<8x512xf32> -> vector<8x512xf32>
    %91 = arith.addf %89, %90 : vector<8x512xf32>
    %92 = vector.extract_strided_slice %91 {offsets = [0, 0], sizes = [8, 128], strides = [1, 1]} : vector<8x512xf32> to vector<8x128xf32>
    %cst_45 = arith.constant 5.000000e-01 : f32
    %93 = vector.broadcast %cst_45 : f32 to vector<8x128xf32>
    %94 = arith.mulf %93, %92 : vector<8x128xf32>
    %95 = math.tanh %94 : vector<8x128xf32>
    %cst_46 = arith.constant 5.000000e-01 : f32
    %96 = vector.broadcast %cst_46 : f32 to vector<8x128xf32>
    %97 = arith.mulf %96, %95 : vector<8x128xf32>
    %cst_47 = arith.constant 5.000000e-01 : f32
    %98 = vector.broadcast %cst_47 : f32 to vector<8x128xf32>
    %99 = arith.addf %97, %98 : vector<8x128xf32>
    %100 = vector.extract_strided_slice %91 {offsets = [0, 128], sizes = [8, 128], strides = [1, 1]} : vector<8x512xf32> to vector<8x128xf32>
    %cst_48 = arith.constant 5.000000e-01 : f32
    %101 = vector.broadcast %cst_48 : f32 to vector<8x128xf32>
    %102 = arith.mulf %101, %100 : vector<8x128xf32>
    %103 = math.tanh %102 : vector<8x128xf32>
    %cst_49 = arith.constant 5.000000e-01 : f32
    %104 = vector.broadcast %cst_49 : f32 to vector<8x128xf32>
    %105 = arith.mulf %104, %103 : vector<8x128xf32>
    %cst_50 = arith.constant 5.000000e-01 : f32
    %106 = vector.broadcast %cst_50 : f32 to vector<8x128xf32>
    %107 = arith.addf %105, %106 : vector<8x128xf32>
    %108 = vector.extract_strided_slice %91 {offsets = [0, 256], sizes = [8, 128], strides = [1, 1]} : vector<8x512xf32> to vector<8x128xf32>
    %109 = math.tanh %108 : vector<8x128xf32>
    %110 = vector.extract_strided_slice %91 {offsets = [0, 384], sizes = [8, 128], strides = [1, 1]} : vector<8x512xf32> to vector<8x128xf32>
    %cst_51 = arith.constant 5.000000e-01 : f32
    %111 = vector.broadcast %cst_51 : f32 to vector<8x128xf32>
    %112 = arith.mulf %111, %110 : vector<8x128xf32>
    %113 = math.tanh %112 : vector<8x128xf32>
    %cst_52 = arith.constant 5.000000e-01 : f32
    %114 = vector.broadcast %cst_52 : f32 to vector<8x128xf32>
    %115 = arith.mulf %114, %113 : vector<8x128xf32>
    %cst_53 = arith.constant 5.000000e-01 : f32
    %116 = vector.broadcast %cst_53 : f32 to vector<8x128xf32>
    %117 = arith.addf %115, %116 : vector<8x128xf32>
    %118 = arith.mulf %107, %79 : vector<8x128xf32>
    %119 = arith.mulf %99, %109 : vector<8x128xf32>
    %120 = arith.addf %118, %119 : vector<8x128xf32>
    %121 = math.tanh %120 : vector<8x128xf32>
    %122 = arith.mulf %117, %121 : vector<8x128xf32>
    %c2_54 = arith.constant 2 : index
    %c0_55 = arith.constant 0 : index
    %c0_56 = arith.constant 0 : index
    %123 = vector.load %arg4[%c2_54, %c0_55, %c0_56] : memref<8x8x128xf32, #tpu.memory_space<vmem>>, vector<1x8x128xf32>
    %124 = vector.shape_cast %123 : vector<1x8x128xf32> to vector<8x128xf32>
    %125 = vector.shape_cast %122 : vector<8x128xf32> to vector<1x8x128xf32>
    tpu.vector_store %arg4[%c2_54, %c0_55, %c0_56], %125 {strides = array<i32>} : memref<8x8x128xf32, #tpu.memory_space<vmem>>, vector<1x8x128xf32>,
    %c2_57 = arith.constant 2 : index
    %c0_58 = arith.constant 0 : index
    %c0_59 = arith.constant 0 : index
    %126 = vector.load %arg5[%c2_57, %c0_58, %c0_59] : memref<8x8x128xf32, #tpu.memory_space<vmem>>, vector<1x8x128xf32>
    %127 = vector.shape_cast %126 : vector<1x8x128xf32> to vector<8x128xf32>
    %128 = vector.shape_cast %120 : vector<8x128xf32> to vector<1x8x128xf32>
    tpu.vector_store %arg5[%c2_57, %c0_58, %c0_59], %128 {strides = array<i32>} : memref<8x8x128xf32, #tpu.memory_space<vmem>>, vector<1x8x128xf32>,
    %c3 = arith.constant 3 : index
    %c0_60 = arith.constant 0 : index
    %c0_61 = arith.constant 0 : index
    %129 = vector.load %arg2[%c3, %c0_60, %c0_61] : memref<8x8x512xf32, #tpu.memory_space<vmem>>, vector<1x8x512xf32>
    %130 = vector.shape_cast %129 : vector<1x8x512xf32> to vector<8x512xf32>
    %cst_62 = arith.constant dense<0.000000e+00> : vector<8x512xf32>
    %131 = tpu.matmul %122, %3, %cst_62 {dimension_numbers = #tpu.dot_dimension_numbers<[1], [0], [0], [1], [0, 0, 1, 1], [], []>} : vector<8x128xf32>, vector<128x512xf32>, vector<8x512xf32> -> vector<8x512xf32>
    %132 = arith.addf %130, %131 : vector<8x512xf32>
    %133 = vector.extract_strided_slice %132 {offsets = [0, 0], sizes = [8, 128], strides = [1, 1]} : vector<8x512xf32> to vector<8x128xf32>
    %cst_63 = arith.constant 5.000000e-01 : f32
    %134 = vector.broadcast %cst_63 : f32 to vector<8x128xf32>
    %135 = arith.mulf %134, %133 : vector<8x128xf32>
    %136 = math.tanh %135 : vector<8x128xf32>
    %cst_64 = arith.constant 5.000000e-01 : f32
    %137 = vector.broadcast %cst_64 : f32 to vector<8x128xf32>
    %138 = arith.mulf %137, %136 : vector<8x128xf32>
    %cst_65 = arith.constant 5.000000e-01 : f32
    %139 = vector.broadcast %cst_65 : f32 to vector<8x128xf32>
    %140 = arith.addf %138, %139 : vector<8x128xf32>
    %141 = vector.extract_strided_slice %132 {offsets = [0, 128], sizes = [8, 128], strides = [1, 1]} : vector<8x512xf32> to vector<8x128xf32>
    %cst_66 = arith.constant 5.000000e-01 : f32
    %142 = vector.broadcast %cst_66 : f32 to vector<8x128xf32>
    %143 = arith.mulf %142, %141 : vector<8x128xf32>
    %144 = math.tanh %143 : vector<8x128xf32>
    %cst_67 = arith.constant 5.000000e-01 : f32
    %145 = vector.broadcast %cst_67 : f32 to vector<8x128xf32>
    %146 = arith.mulf %145, %144 : vector<8x128xf32>
    %cst_68 = arith.constant 5.000000e-01 : f32
    %147 = vector.broadcast %cst_68 : f32 to vector<8x128xf32>
    %148 = arith.addf %146, %147 : vector<8x128xf32>
    %149 = vector.extract_strided_slice %132 {offsets = [0, 256], sizes = [8, 128], strides = [1, 1]} : vector<8x512xf32> to vector<8x128xf32>
    %150 = math.tanh %149 : vector<8x128xf32>
    %151 = vector.extract_strided_slice %132 {offsets = [0, 384], sizes = [8, 128], strides = [1, 1]} : vector<8x512xf32> to vector<8x128xf32>
    %cst_69 = arith.constant 5.000000e-01 : f32
    %152 = vector.broadcast %cst_69 : f32 to vector<8x128xf32>
    %153 = arith.mulf %152, %151 : vector<8x128xf32>
    %154 = math.tanh %153 : vector<8x128xf32>
    %cst_70 = arith.constant 5.000000e-01 : f32
    %155 = vector.broadcast %cst_70 : f32 to vector<8x128xf32>
    %156 = arith.mulf %155, %154 : vector<8x128xf32>
    %cst_71 = arith.constant 5.000000e-01 : f32
    %157 = vector.broadcast %cst_71 : f32 to vector<8x128xf32>
    %158 = arith.addf %156, %157 : vector<8x128xf32>
    %159 = arith.mulf %148, %120 : vector<8x128xf32>
    %160 = arith.mulf %140, %150 : vector<8x128xf32>
    %161 = arith.addf %159, %160 : vector<8x128xf32>
    %162 = math.tanh %161 : vector<8x128xf32>
    %163 = arith.mulf %158, %162 : vector<8x128xf32>
    %c3_72 = arith.constant 3 : index
    %c0_73 = arith.constant 0 : index
    %c0_74 = arith.constant 0 : index
    %164 = vector.load %arg4[%c3_72, %c0_73, %c0_74] : memref<8x8x128xf32, #tpu.memory_space<vmem>>, vector<1x8x128xf32>
    %165 = vector.shape_cast %164 : vector<1x8x128xf32> to vector<8x128xf32>
    %166 = vector.shape_cast %163 : vector<8x128xf32> to vector<1x8x128xf32>
    tpu.vector_store %arg4[%c3_72, %c0_73, %c0_74], %166 {strides = array<i32>} : memref<8x8x128xf32, #tpu.memory_space<vmem>>, vector<1x8x128xf32>,
    %c3_75 = arith.constant 3 : index
    %c0_76 = arith.constant 0 : index
    %c0_77 = arith.constant 0 : index
    %167 = vector.load %arg5[%c3_75, %c0_76, %c0_77] : memref<8x8x128xf32, #tpu.memory_space<vmem>>, vector<1x8x128xf32>
    %168 = vector.shape_cast %167 : vector<1x8x128xf32> to vector<8x128xf32>
    %169 = vector.shape_cast %161 : vector<8x128xf32> to vector<1x8x128xf32>
    tpu.vector_store %arg5[%c3_75, %c0_76, %c0_77], %169 {strides = array<i32>} : memref<8x8x128xf32, #tpu.memory_space<vmem>>, vector<1x8x128xf32>,
    %c4 = arith.constant 4 : index
    %c0_78 = arith.constant 0 : index
    %c0_79 = arith.constant 0 : index
    %170 = vector.load %arg2[%c4, %c0_78, %c0_79] : memref<8x8x512xf32, #tpu.memory_space<vmem>>, vector<1x8x512xf32>
    %171 = vector.shape_cast %170 : vector<1x8x512xf32> to vector<8x512xf32>
    %cst_80 = arith.constant dense<0.000000e+00> : vector<8x512xf32>
    %172 = tpu.matmul %163, %3, %cst_80 {dimension_numbers = #tpu.dot_dimension_numbers<[1], [0], [0], [1], [0, 0, 1, 1], [], []>} : vector<8x128xf32>, vector<128x512xf32>, vector<8x512xf32> -> vector<8x512xf32>
    %173 = arith.addf %171, %172 : vector<8x512xf32>
    %174 = vector.extract_strided_slice %173 {offsets = [0, 0], sizes = [8, 128], strides = [1, 1]} : vector<8x512xf32> to vector<8x128xf32>
    %cst_81 = arith.constant 5.000000e-01 : f32
    %175 = vector.broadcast %cst_81 : f32 to vector<8x128xf32>
    %176 = arith.mulf %175, %174 : vector<8x128xf32>
    %177 = math.tanh %176 : vector<8x128xf32>
    %cst_82 = arith.constant 5.000000e-01 : f32
    %178 = vector.broadcast %cst_82 : f32 to vector<8x128xf32>
    %179 = arith.mulf %178, %177 : vector<8x128xf32>
    %cst_83 = arith.constant 5.000000e-01 : f32
    %180 = vector.broadcast %cst_83 : f32 to vector<8x128xf32>
    %181 = arith.addf %179, %180 : vector<8x128xf32>
    %182 = vector.extract_strided_slice %173 {offsets = [0, 128], sizes = [8, 128], strides = [1, 1]} : vector<8x512xf32> to vector<8x128xf32>
    %cst_84 = arith.constant 5.000000e-01 : f32
    %183 = vector.broadcast %cst_84 : f32 to vector<8x128xf32>
    %184 = arith.mulf %183, %182 : vector<8x128xf32>
    %185 = math.tanh %184 : vector<8x128xf32>
    %cst_85 = arith.constant 5.000000e-01 : f32
    %186 = vector.broadcast %cst_85 : f32 to vector<8x128xf32>
    %187 = arith.mulf %186, %185 : vector<8x128xf32>
    %cst_86 = arith.constant 5.000000e-01 : f32
    %188 = vector.broadcast %cst_86 : f32 to vector<8x128xf32>
    %189 = arith.addf %187, %188 : vector<8x128xf32>
    %190 = vector.extract_strided_slice %173 {offsets = [0, 256], sizes = [8, 128], strides = [1, 1]} : vector<8x512xf32> to vector<8x128xf32>
    %191 = math.tanh %190 : vector<8x128xf32>
    %192 = vector.extract_strided_slice %173 {offsets = [0, 384], sizes = [8, 128], strides = [1, 1]} : vector<8x512xf32> to vector<8x128xf32>
    %cst_87 = arith.constant 5.000000e-01 : f32
    %193 = vector.broadcast %cst_87 : f32 to vector<8x128xf32>
    %194 = arith.mulf %193, %192 : vector<8x128xf32>
    %195 = math.tanh %194 : vector<8x128xf32>
    %cst_88 = arith.constant 5.000000e-01 : f32
    %196 = vector.broadcast %cst_88 : f32 to vector<8x128xf32>
    %197 = arith.mulf %196, %195 : vector<8x128xf32>
    %cst_89 = arith.constant 5.000000e-01 : f32
    %198 = vector.broadcast %cst_89 : f32 to vector<8x128xf32>
    %199 = arith.addf %197, %198 : vector<8x128xf32>
    %200 = arith.mulf %189, %161 : vector<8x128xf32>
    %201 = arith.mulf %181, %191 : vector<8x128xf32>
    %202 = arith.addf %200, %201 : vector<8x128xf32>
    %203 = math.tanh %202 : vector<8x128xf32>
    %204 = arith.mulf %199, %203 : vector<8x128xf32>
    %c4_90 = arith.constant 4 : index
    %c0_91 = arith.constant 0 : index
    %c0_92 = arith.constant 0 : index
    %205 = vector.load %arg4[%c4_90, %c0_91, %c0_92] : memref<8x8x128xf32, #tpu.memory_space<vmem>>, vector<1x8x128xf32>
    %206 = vector.shape_cast %205 : vector<1x8x128xf32> to vector<8x128xf32>
    %207 = vector.shape_cast %204 : vector<8x128xf32> to vector<1x8x128xf32>
    tpu.vector_store %arg4[%c4_90, %c0_91, %c0_92], %207 {strides = array<i32>} : memref<8x8x128xf32, #tpu.memory_space<vmem>>, vector<1x8x128xf32>,
    %c4_93 = arith.constant 4 : index
    %c0_94 = arith.constant 0 : index
    %c0_95 = arith.constant 0 : index
    %208 = vector.load %arg5[%c4_93, %c0_94, %c0_95] : memref<8x8x128xf32, #tpu.memory_space<vmem>>, vector<1x8x128xf32>
    %209 = vector.shape_cast %208 : vector<1x8x128xf32> to vector<8x128xf32>
    %210 = vector.shape_cast %202 : vector<8x128xf32> to vector<1x8x128xf32>
    tpu.vector_store %arg5[%c4_93, %c0_94, %c0_95], %210 {strides = array<i32>} : memref<8x8x128xf32, #tpu.memory_space<vmem>>, vector<1x8x128xf32>,
    %c5 = arith.constant 5 : index
    %c0_96 = arith.constant 0 : index
    %c0_97 = arith.constant 0 : index
    %211 = vector.load %arg2[%c5, %c0_96, %c0_97] : memref<8x8x512xf32, #tpu.memory_space<vmem>>, vector<1x8x512xf32>
    %212 = vector.shape_cast %211 : vector<1x8x512xf32> to vector<8x512xf32>
    %cst_98 = arith.constant dense<0.000000e+00> : vector<8x512xf32>
    %213 = tpu.matmul %204, %3, %cst_98 {dimension_numbers = #tpu.dot_dimension_numbers<[1], [0], [0], [1], [0, 0, 1, 1], [], []>} : vector<8x128xf32>, vector<128x512xf32>, vector<8x512xf32> -> vector<8x512xf32>
    %214 = arith.addf %212, %213 : vector<8x512xf32>
    %215 = vector.extract_strided_slice %214 {offsets = [0, 0], sizes = [8, 128], strides = [1, 1]} : vector<8x512xf32> to vector<8x128xf32>
    %cst_99 = arith.constant 5.000000e-01 : f32
    %216 = vector.broadcast %cst_99 : f32 to vector<8x128xf32>
    %217 = arith.mulf %216, %215 : vector<8x128xf32>
    %218 = math.tanh %217 : vector<8x128xf32>
    %cst_100 = arith.constant 5.000000e-01 : f32
    %219 = vector.broadcast %cst_100 : f32 to vector<8x128xf32>
    %220 = arith.mulf %219, %218 : vector<8x128xf32>
    %cst_101 = arith.constant 5.000000e-01 : f32
    %221 = vector.broadcast %cst_101 : f32 to vector<8x128xf32>
    %222 = arith.addf %220, %221 : vector<8x128xf32>
    %223 = vector.extract_strided_slice %214 {offsets = [0, 128], sizes = [8, 128], strides = [1, 1]} : vector<8x512xf32> to vector<8x128xf32>
    %cst_102 = arith.constant 5.000000e-01 : f32
    %224 = vector.broadcast %cst_102 : f32 to vector<8x128xf32>
    %225 = arith.mulf %224, %223 : vector<8x128xf32>
    %226 = math.tanh %225 : vector<8x128xf32>
    %cst_103 = arith.constant 5.000000e-01 : f32
    %227 = vector.broadcast %cst_103 : f32 to vector<8x128xf32>
    %228 = arith.mulf %227, %226 : vector<8x128xf32>
    %cst_104 = arith.constant 5.000000e-01 : f32
    %229 = vector.broadcast %cst_104 : f32 to vector<8x128xf32>
    %230 = arith.addf %228, %229 : vector<8x128xf32>
    %231 = vector.extract_strided_slice %214 {offsets = [0, 256], sizes = [8, 128], strides = [1, 1]} : vector<8x512xf32> to vector<8x128xf32>
    %232 = math.tanh %231 : vector<8x128xf32>
    %233 = vector.extract_strided_slice %214 {offsets = [0, 384], sizes = [8, 128], strides = [1, 1]} : vector<8x512xf32> to vector<8x128xf32>
    %cst_105 = arith.constant 5.000000e-01 : f32
    %234 = vector.broadcast %cst_105 : f32 to vector<8x128xf32>
    %235 = arith.mulf %234, %233 : vector<8x128xf32>
    %236 = math.tanh %235 : vector<8x128xf32>
    %cst_106 = arith.constant 5.000000e-01 : f32
    %237 = vector.broadcast %cst_106 : f32 to vector<8x128xf32>
    %238 = arith.mulf %237, %236 : vector<8x128xf32>
    %cst_107 = arith.constant 5.000000e-01 : f32
    %239 = vector.broadcast %cst_107 : f32 to vector<8x128xf32>
    %240 = arith.addf %238, %239 : vector<8x128xf32>
    %241 = arith.mulf %230, %202 : vector<8x128xf32>
    %242 = arith.mulf %222, %232 : vector<8x128xf32>
    %243 = arith.addf %241, %242 : vector<8x128xf32>
    %244 = math.tanh %243 : vector<8x128xf32>
    %245 = arith.mulf %240, %244 : vector<8x128xf32>
    %c5_108 = arith.constant 5 : index
    %c0_109 = arith.constant 0 : index
    %c0_110 = arith.constant 0 : index
    %246 = vector.load %arg4[%c5_108, %c0_109, %c0_110] : memref<8x8x128xf32, #tpu.memory_space<vmem>>, vector<1x8x128xf32>
    %247 = vector.shape_cast %246 : vector<1x8x128xf32> to vector<8x128xf32>
    %248 = vector.shape_cast %245 : vector<8x128xf32> to vector<1x8x128xf32>
    tpu.vector_store %arg4[%c5_108, %c0_109, %c0_110], %248 {strides = array<i32>} : memref<8x8x128xf32, #tpu.memory_space<vmem>>, vector<1x8x128xf32>,
    %c5_111 = arith.constant 5 : index
    %c0_112 = arith.constant 0 : index
    %c0_113 = arith.constant 0 : index
    %249 = vector.load %arg5[%c5_111, %c0_112, %c0_113] : memref<8x8x128xf32, #tpu.memory_space<vmem>>, vector<1x8x128xf32>
    %250 = vector.shape_cast %249 : vector<1x8x128xf32> to vector<8x128xf32>
    %251 = vector.shape_cast %243 : vector<8x128xf32> to vector<1x8x128xf32>
    tpu.vector_store %arg5[%c5_111, %c0_112, %c0_113], %251 {strides = array<i32>} : memref<8x8x128xf32, #tpu.memory_space<vmem>>, vector<1x8x128xf32>,
    %c6 = arith.constant 6 : index
    %c0_114 = arith.constant 0 : index
    %c0_115 = arith.constant 0 : index
    %252 = vector.load %arg2[%c6, %c0_114, %c0_115] : memref<8x8x512xf32, #tpu.memory_space<vmem>>, vector<1x8x512xf32>
    %253 = vector.shape_cast %252 : vector<1x8x512xf32> to vector<8x512xf32>
    %cst_116 = arith.constant dense<0.000000e+00> : vector<8x512xf32>
    %254 = tpu.matmul %245, %3, %cst_116 {dimension_numbers = #tpu.dot_dimension_numbers<[1], [0], [0], [1], [0, 0, 1, 1], [], []>} : vector<8x128xf32>, vector<128x512xf32>, vector<8x512xf32> -> vector<8x512xf32>
    %255 = arith.addf %253, %254 : vector<8x512xf32>
    %256 = vector.extract_strided_slice %255 {offsets = [0, 0], sizes = [8, 128], strides = [1, 1]} : vector<8x512xf32> to vector<8x128xf32>
    %cst_117 = arith.constant 5.000000e-01 : f32
    %257 = vector.broadcast %cst_117 : f32 to vector<8x128xf32>
    %258 = arith.mulf %257, %256 : vector<8x128xf32>
    %259 = math.tanh %258 : vector<8x128xf32>
    %cst_118 = arith.constant 5.000000e-01 : f32
    %260 = vector.broadcast %cst_118 : f32 to vector<8x128xf32>
    %261 = arith.mulf %260, %259 : vector<8x128xf32>
    %cst_119 = arith.constant 5.000000e-01 : f32
    %262 = vector.broadcast %cst_119 : f32 to vector<8x128xf32>
    %263 = arith.addf %261, %262 : vector<8x128xf32>
    %264 = vector.extract_strided_slice %255 {offsets = [0, 128], sizes = [8, 128], strides = [1, 1]} : vector<8x512xf32> to vector<8x128xf32>
    %cst_120 = arith.constant 5.000000e-01 : f32
    %265 = vector.broadcast %cst_120 : f32 to vector<8x128xf32>
    %266 = arith.mulf %265, %264 : vector<8x128xf32>
    %267 = math.tanh %266 : vector<8x128xf32>
    %cst_121 = arith.constant 5.000000e-01 : f32
    %268 = vector.broadcast %cst_121 : f32 to vector<8x128xf32>
    %269 = arith.mulf %268, %267 : vector<8x128xf32>
    %cst_122 = arith.constant 5.000000e-01 : f32
    %270 = vector.broadcast %cst_122 : f32 to vector<8x128xf32>
    %271 = arith.addf %269, %270 : vector<8x128xf32>
    %272 = vector.extract_strided_slice %255 {offsets = [0, 256], sizes = [8, 128], strides = [1, 1]} : vector<8x512xf32> to vector<8x128xf32>
    %273 = math.tanh %272 : vector<8x128xf32>
    %274 = vector.extract_strided_slice %255 {offsets = [0, 384], sizes = [8, 128], strides = [1, 1]} : vector<8x512xf32> to vector<8x128xf32>
    %cst_123 = arith.constant 5.000000e-01 : f32
    %275 = vector.broadcast %cst_123 : f32 to vector<8x128xf32>
    %276 = arith.mulf %275, %274 : vector<8x128xf32>
    %277 = math.tanh %276 : vector<8x128xf32>
    %cst_124 = arith.constant 5.000000e-01 : f32
    %278 = vector.broadcast %cst_124 : f32 to vector<8x128xf32>
    %279 = arith.mulf %278, %277 : vector<8x128xf32>
    %cst_125 = arith.constant 5.000000e-01 : f32
    %280 = vector.broadcast %cst_125 : f32 to vector<8x128xf32>
    %281 = arith.addf %279, %280 : vector<8x128xf32>
    %282 = arith.mulf %271, %243 : vector<8x128xf32>
    %283 = arith.mulf %263, %273 : vector<8x128xf32>
    %284 = arith.addf %282, %283 : vector<8x128xf32>
    %285 = math.tanh %284 : vector<8x128xf32>
    %286 = arith.mulf %281, %285 : vector<8x128xf32>
    %c6_126 = arith.constant 6 : index
    %c0_127 = arith.constant 0 : index
    %c0_128 = arith.constant 0 : index
    %287 = vector.load %arg4[%c6_126, %c0_127, %c0_128] : memref<8x8x128xf32, #tpu.memory_space<vmem>>, vector<1x8x128xf32>
    %288 = vector.shape_cast %287 : vector<1x8x128xf32> to vector<8x128xf32>
    %289 = vector.shape_cast %286 : vector<8x128xf32> to vector<1x8x128xf32>
    tpu.vector_store %arg4[%c6_126, %c0_127, %c0_128], %289 {strides = array<i32>} : memref<8x8x128xf32, #tpu.memory_space<vmem>>, vector<1x8x128xf32>,
    %c6_129 = arith.constant 6 : index
    %c0_130 = arith.constant 0 : index
    %c0_131 = arith.constant 0 : index
    %290 = vector.load %arg5[%c6_129, %c0_130, %c0_131] : memref<8x8x128xf32, #tpu.memory_space<vmem>>, vector<1x8x128xf32>
    %291 = vector.shape_cast %290 : vector<1x8x128xf32> to vector<8x128xf32>
    %292 = vector.shape_cast %284 : vector<8x128xf32> to vector<1x8x128xf32>
    tpu.vector_store %arg5[%c6_129, %c0_130, %c0_131], %292 {strides = array<i32>} : memref<8x8x128xf32, #tpu.memory_space<vmem>>, vector<1x8x128xf32>,
    %c7 = arith.constant 7 : index
    %c0_132 = arith.constant 0 : index
    %c0_133 = arith.constant 0 : index
    %293 = vector.load %arg2[%c7, %c0_132, %c0_133] : memref<8x8x512xf32, #tpu.memory_space<vmem>>, vector<1x8x512xf32>
    %294 = vector.shape_cast %293 : vector<1x8x512xf32> to vector<8x512xf32>
    %cst_134 = arith.constant dense<0.000000e+00> : vector<8x512xf32>
    %295 = tpu.matmul %286, %3, %cst_134 {dimension_numbers = #tpu.dot_dimension_numbers<[1], [0], [0], [1], [0, 0, 1, 1], [], []>} : vector<8x128xf32>, vector<128x512xf32>, vector<8x512xf32> -> vector<8x512xf32>
    %296 = arith.addf %294, %295 : vector<8x512xf32>
    %297 = vector.extract_strided_slice %296 {offsets = [0, 0], sizes = [8, 128], strides = [1, 1]} : vector<8x512xf32> to vector<8x128xf32>
    %cst_135 = arith.constant 5.000000e-01 : f32
    %298 = vector.broadcast %cst_135 : f32 to vector<8x128xf32>
    %299 = arith.mulf %298, %297 : vector<8x128xf32>
    %300 = math.tanh %299 : vector<8x128xf32>
    %cst_136 = arith.constant 5.000000e-01 : f32
    %301 = vector.broadcast %cst_136 : f32 to vector<8x128xf32>
    %302 = arith.mulf %301, %300 : vector<8x128xf32>
    %cst_137 = arith.constant 5.000000e-01 : f32
    %303 = vector.broadcast %cst_137 : f32 to vector<8x128xf32>
    %304 = arith.addf %302, %303 : vector<8x128xf32>
    %305 = vector.extract_strided_slice %296 {offsets = [0, 128], sizes = [8, 128], strides = [1, 1]} : vector<8x512xf32> to vector<8x128xf32>
    %cst_138 = arith.constant 5.000000e-01 : f32
    %306 = vector.broadcast %cst_138 : f32 to vector<8x128xf32>
    %307 = arith.mulf %306, %305 : vector<8x128xf32>
    %308 = math.tanh %307 : vector<8x128xf32>
    %cst_139 = arith.constant 5.000000e-01 : f32
    %309 = vector.broadcast %cst_139 : f32 to vector<8x128xf32>
    %310 = arith.mulf %309, %308 : vector<8x128xf32>
    %cst_140 = arith.constant 5.000000e-01 : f32
    %311 = vector.broadcast %cst_140 : f32 to vector<8x128xf32>
    %312 = arith.addf %310, %311 : vector<8x128xf32>
    %313 = vector.extract_strided_slice %296 {offsets = [0, 256], sizes = [8, 128], strides = [1, 1]} : vector<8x512xf32> to vector<8x128xf32>
    %314 = math.tanh %313 : vector<8x128xf32>
    %315 = vector.extract_strided_slice %296 {offsets = [0, 384], sizes = [8, 128], strides = [1, 1]} : vector<8x512xf32> to vector<8x128xf32>
    %cst_141 = arith.constant 5.000000e-01 : f32
    %316 = vector.broadcast %cst_141 : f32 to vector<8x128xf32>
    %317 = arith.mulf %316, %315 : vector<8x128xf32>
    %318 = math.tanh %317 : vector<8x128xf32>
    %cst_142 = arith.constant 5.000000e-01 : f32
    %319 = vector.broadcast %cst_142 : f32 to vector<8x128xf32>
    %320 = arith.mulf %319, %318 : vector<8x128xf32>
    %cst_143 = arith.constant 5.000000e-01 : f32
    %321 = vector.broadcast %cst_143 : f32 to vector<8x128xf32>
    %322 = arith.addf %320, %321 : vector<8x128xf32>
    %323 = arith.mulf %312, %284 : vector<8x128xf32>
    %324 = arith.mulf %304, %314 : vector<8x128xf32>
    %325 = arith.addf %323, %324 : vector<8x128xf32>
    %326 = math.tanh %325 : vector<8x128xf32>
    %327 = arith.mulf %322, %326 : vector<8x128xf32>
    %c7_144 = arith.constant 7 : index
    %c0_145 = arith.constant 0 : index
    %c0_146 = arith.constant 0 : index
    %328 = vector.load %arg4[%c7_144, %c0_145, %c0_146] : memref<8x8x128xf32, #tpu.memory_space<vmem>>, vector<1x8x128xf32>
    %329 = vector.shape_cast %328 : vector<1x8x128xf32> to vector<8x128xf32>
    %330 = vector.shape_cast %327 : vector<8x128xf32> to vector<1x8x128xf32>
    tpu.vector_store %arg4[%c7_144, %c0_145, %c0_146], %330 {strides = array<i32>} : memref<8x8x128xf32, #tpu.memory_space<vmem>>, vector<1x8x128xf32>,
    %c7_147 = arith.constant 7 : index
    %c0_148 = arith.constant 0 : index
    %c0_149 = arith.constant 0 : index
    %331 = vector.load %arg5[%c7_147, %c0_148, %c0_149] : memref<8x8x128xf32, #tpu.memory_space<vmem>>, vector<1x8x128xf32>
    %332 = vector.shape_cast %331 : vector<1x8x128xf32> to vector<8x128xf32>
    %333 = vector.shape_cast %325 : vector<8x128xf32> to vector<1x8x128xf32>
    tpu.vector_store %arg5[%c7_147, %c0_148, %c0_149], %333 {strides = array<i32>} : memref<8x8x128xf32, #tpu.memory_space<vmem>>, vector<1x8x128xf32>,
    %c0_150 = arith.constant 0 : index
    %c0_151 = arith.constant 0 : index
    %334 = vector.load %arg8[%c0_150, %c0_151] : memref<8x128xf32, #tpu.memory_space<vmem>>, vector<8x128xf32>
    tpu.vector_store %arg8[%c0_150, %c0_151], %327 {strides = array<i32>} : memref<8x128xf32, #tpu.memory_space<vmem>>, vector<8x128xf32>,
    %c0_152 = arith.constant 0 : index
    %c0_153 = arith.constant 0 : index
    %335 = vector.load %arg9[%c0_152, %c0_153] : memref<8x128xf32, #tpu.memory_space<vmem>>, vector<8x128xf32>
    tpu.vector_store %arg9[%c0_152, %c0_153], %325 {strides = array<i32>} : memref<8x128xf32, #tpu.memory_space<vmem>>, vector<8x128xf32>,
    return
  }
  func.func @transform_0(%arg0: i32, %arg1: i32) -> (i32, i32, i32) {
    %c0_i32 = arith.constant 0 : i32
    %c0_i32_0 = arith.constant 0 : i32
    return %arg1, %arg0, %c0_i32 : i32, i32, i32
  }
  func.func @transform_2(%arg0: i32, %arg1: i32) -> (i32, i32, i32) {
    %c0_i32 = arith.constant 0 : i32
    %c0_i32_0 = arith.constant 0 : i32
    return %arg1, %arg0, %c0_i32 : i32, i32, i32
  }
  func.func @transform_3(%arg0: i32, %arg1: i32) -> (i32, i32, i32) {
    %c0_i32 = arith.constant 0 : i32
    %c0_i32_0 = arith.constant 0 : i32
    return %arg1, %arg0, %c0_i32 : i32, i32, i32
  }
}

</mosaic_0001>

<llo_original>
// kernel: lstm_pallas.1
$region0: #{lstm_pallas.1}
  #allocation0 [shape = 'u32[]', space=smem, size = 0x4, offset = 0x4, fixed_abs, tag = 'smem constant byte address 0x4 - core index']
  #allocation1 [shape = 'u32[144,128]{1,0:T(1,128)}', space=vmem, size = 0x12000, scoped, tag = 'internal scratch']
  #allocation2 [shape = 'f32[128,512]{1,0:T(8,128)}', space=vmem, size = 0x40000, scoped, tag = 'scratch operand']
  #allocation3 [shape = 's32[1]{0}', space=sflag, size = 0x4, scoped, tag = 'scratch operand']
  #allocation4 [shape = 'f32[8,128]{1,0:T(8,128)}', space=vmem, size = 0x1000, scoped, tag = 'scratch operand']
  #allocation5 [shape = 'f32[8,128]{1,0:T(8,128)}', space=vmem, size = 0x1000, scoped, tag = 'scratch operand']
  #allocation6 [shape = 's32[]', space=sflag, size = 0x4, offset = 0, fixed_abs, tag = 'sflag constant byte address 0x0 - dummy sync flag']
  %s0 = inlined_call_operand.vmem [shape: f32[8,8,512], index: 0, kind: input, shape index: {}]
  %s1 = inlined_call_operand.vmem [shape: f32[128,512], index: 1, kind: input, shape index: {}]
  %s2 = inlined_call_operand.vmem [shape: f32[8,8,128], index: 2, kind: output, shape index: {0}]
  %s3 = inlined_call_operand.vmem [shape: f32[8,8,128], index: 3, kind: output, shape index: {1}]
  %4 = xla_tuple %s2, %s3
  %s5 = sld [smem:[#allocation0]]
  $region60: #{lstm_pallas.1} parent=0
    _
  %s7 = ssub.s32 1, %s5
  %s8 = scalar_select 0, %s7, %s5
  // Predicated region
  $region2: #{lstm_pallas.1} parent=0 // pred_check
    _
  $region3: #{lstm_pallas.1} parent=0 // pred_check_branch
    %10 = sbr.rel (0) target = $region5
  $region4: #{lstm_pallas.1} parent=0 // pred_region
    _
  $region5: #{lstm_pallas.1} parent=0 // pred_fallthru
    _
  %p11 = scmp.eq.s32.totalorder 0, 0
  // Predicated region
  $region6: #{lstm_pallas.1} parent=0 // pred_check
    %p12 = pneg %p11
  $region7: #{lstm_pallas.1} parent=0 // pred_check_branch
    %14 = sbr.rel (%p12) target = $region9
  $region8: #{lstm_pallas.1} parent=0 // pred_region
    %p16 = scmp.lt.u32.totalorder 512, 8
    %p17 = pneg %p16
    // Predicated region
    $region10: #{lstm_pallas.1} parent=8 // pred_check
      _
    $region11: #{lstm_pallas.1} parent=8 // pred_check_branch
      %19 = sbr.rel (%p16) target = $region13
    $region12: #{lstm_pallas.1} parent=8 // pred_region
      %s34 = sand.u32 512, 7
      %p35 = scmp.eq.s32.totalorder %s34, 0
      // Predicated region
      $region25: #{lstm_pallas.1} parent=12 // pred_check
        %p36 = pneg %p35
      $region26: #{lstm_pallas.1} parent=12 // pred_check_branch
        %38 = sbr.rel (%p36) target = $region28
      $region27: #{lstm_pallas.1} parent=12 // pred_region
        loop: start=0, step=1, limit=1
        $region29: #{lstm_pallas.1} parent=27 // loop_pre_header
          _
        $region30: #{lstm_pallas.1} parent=27 // loop_header
          %s40 = sphi 0, %s44
          %p41 = scmp.ge.s32.totalorder %s40, 1
          %s45 = sphi %s1, %s1
          %s46 = sphi [#allocation2], [#allocation2]
        $region31: #{lstm_pallas.1} parent=27 // loop_header_branch
          %43 = sbr.rel (%p41) target = $region35
        $region32: #{lstm_pallas.1} parent=27 // loop_body
          %v47 = vld [vmem:[%s45] sm:$0xff]
          %48 = vst [vmem:[%s46] sm:$0xff] %v47
          %v49 = vld [vmem:[%s45 + $0x8] sm:$0xff]
          %50 = vst [vmem:[%s46 + $0x8] sm:$0xff] %v49
          %v51 = vld [vmem:[%s45 + $0x10] sm:$0xff]
          %52 = vst [vmem:[%s46 + $0x10] sm:$0xff] %v51
          %v53 = vld [vmem:[%s45 + $0x18] sm:$0xff]
          %54 = vst [vmem:[%s46 + $0x18] sm:$0xff] %v53
          %v55 = vld [vmem:[%s45 + $0x20] sm:$0xff]
          %56 = vst [vmem:[%s46 + $0x20] sm:$0xff] %v55
          %v57 = vld [vmem:[%s45 + $0x28] sm:$0xff]
          %58 = vst [vmem:[%s46 + $0x28] sm:$0xff] %v57
          %v59 = vld [vmem:[%s45 + $0x30] sm:$0xff]
          %60 = vst [vmem:[%s46 + $0x30] sm:$0xff] %v59
          %v61 = vld [vmem:[%s45 + $0x38] sm:$0xff]
          %62 = vst [vmem:[%s46 + $0x38] sm:$0xff] %v61
          %v63 = vld [vmem:[%s45 + $0x40] sm:$0xff]
          %64 = vst [vmem:[%s46 + $0x40] sm:$0xff] %v63
          %v65 = vld [vmem:[%s45 + $0x48] sm:$0xff]
          %66 = vst [vmem:[%s46 + $0x48] sm:$0xff] %v65
          %v67 = vld [vmem:[%s45 + $0x50] sm:$0xff]
          %68 = vst [vmem:[%s46 + $0x50] sm:$0xff] %v67
          %v69 = vld [vmem:[%s45 + $0x58] sm:$0xff]
          %70 = vst [vmem:[%s46 + $0x58] sm:$0xff] %v69
          %v71 = vld [vmem:[%s45 + $0x60] sm:$0xff]
          %72 = vst [vmem:[%s46 + $0x60] sm:$0xff] %v71
          %v73 = vld [vmem:[%s45 + $0x68] sm:$0xff]
          %74 = vst [vmem:[%s46 + $0x68] sm:$0xff] %v73
          %v75 = vld [vmem:[%s45 + $0x70] sm:$0xff]
          %76 = vst [vmem:[%s46 + $0x70] sm:$0xff] %v75
          %v77 = vld [vmem:[%s45 + $0x78] sm:$0xff]
          %78 = vst [vmem:[%s46 + $0x78] sm:$0xff] %v77
          %v79 = vld [vmem:[%s45 + $0x80] sm:$0xff]
          %80 = vst [vmem:[%s46 + $0x80] sm:$0xff] %v79
          %v81 = vld [vmem:[%s45 + $0x88] sm:$0xff]
          %82 = vst [vmem:[%s46 + $0x88] sm:$0xff] %v81
          %v83 = vld [vmem:[%s45 + $0x90] sm:$0xff]
          %84 = vst [vmem:[%s46 + $0x90] sm:$0xff] %v83
          %v85 = vld [vmem:[%s45 + $0x98] sm:$0xff]
          %86 = vst [vmem:[%s46 + $0x98] sm:$0xff] %v85
          %v87 = vld [vmem:[%s45 + $0xa0] sm:$0xff]
          %88 = vst [vmem:[%s46 + $0xa0] sm:$0xff] %v87
          %v89 = vld [vmem:[%s45 + $0xa8] sm:$0xff]
          %90 = vst [vmem:[%s46 + $0xa8] sm:$0xff] %v89
          %v91 = vld [vmem:[%s45 + $0xb0] sm:$0xff]
          %92 = vst [vmem:[%s46 + $0xb0] sm:$0xff] %v91
          %v93 = vld [vmem:[%s45 + $0xb8] sm:$0xff]
          %94 = vst [vmem:[%s46 + $0xb8] sm:$0xff] %v93
          %v95 = vld [vmem:[%s45 + $0xc0] sm:$0xff]
          %96 = vst [vmem:[%s46 + $0xc0] sm:$0xff] %v95
          %v97 = vld [vmem:[%s45 + $0xc8] sm:$0xff]
          %98 = vst [vmem:[%s46 + $0xc8] sm:$0xff] %v97
          %v99 = vld [vmem:[%s45 + $0xd0] sm:$0xff]
          %100 = vst [vmem:[%s46 + $0xd0] sm:$0xff] %v99
          %v101 = vld [vmem:[%s45 + $0xd8] sm:$0xff]
          %102 = vst [vmem:[%s46 + $0xd8] sm:$0xff] %v101
          %v103 = vld [vmem:[%s45 + $0xe0] sm:$0xff]
          %104 = vst [vmem:[%s46 + $0xe0] sm:$0xff] %v103
          %v105 = vld [vmem:[%s45 + $0xe8] sm:$0xff]
          %106 = vst [vmem:[%s46 + $0xe8] sm:$0xff] %v105
          %v107 = vld [vmem:[%s45 + $0xf0] sm:$0xff]
          %108 = vst [vmem:[%s46 + $0xf0] sm:$0xff] %v107
          %v109 = vld [vmem:[%s45 + $0xf8] sm:$0xff]
          %110 = vst [vmem:[%s46 + $0xf8] sm:$0xff] %v109
          %v111 = vld [vmem:[%s45 + $0x100] sm:$0xff]
          %112 = vst [vmem:[%s46 + $0x100] sm:$0xff] %v111
          %v113 = vld [vmem:[%s45 + $0x108] sm:$0xff]
          %114 = vst [vmem:[%s46 + $0x108] sm:$0xff] %v113
          %v115 = vld [vmem:[%s45 + $0x110] sm:$0xff]
          %116 = vst [vmem:[%s46 + $0x110] sm:$0xff] %v115
          %v117 = vld [vmem:[%s45 + $0x118] sm:$0xff]
          %118 = vst [vmem:[%s46 + $0x118] sm:$0xff] %v117
          %v119 = vld [vmem:[%s45 + $0x120] sm:$0xff]
          %120 = vst [vmem:[%s46 + $0x120] sm:$0xff] %v119
          %v121 = vld [vmem:[%s45 + $0x128] sm:$0xff]
          %122 = vst [vmem:[%s46 + $0x128] sm:$0xff] %v121
          %v123 = vld [vmem:[%s45 + $0x130] sm:$0xff]
          %124 = vst [vmem:[%s46 + $0x130] sm:$0xff] %v123
          %v125 = vld [vmem:[%s45 + $0x138] sm:$0xff]
          %126 = vst [vmem:[%s46 + $0x138] sm:$0xff] %v125
          %v127 = vld [vmem:[%s45 + $0x140] sm:$0xff]
          %128 = vst [vmem:[%s46 + $0x140] sm:$0xff] %v127
          %v129 = vld [vmem:[%s45 + $0x148] sm:$0xff]
          %130 = vst [vmem:[%s46 + $0x148] sm:$0xff] %v129
          %v131 = vld [vmem:[%s45 + $0x150] sm:$0xff]
          %132 = vst [vmem:[%s46 + $0x150] sm:$0xff] %v131
          %v133 = vld [vmem:[%s45 + $0x158] sm:$0xff]
          %134 = vst [vmem:[%s46 + $0x158] sm:$0xff] %v133
          %v135 = vld [vmem:[%s45 + $0x160] sm:$0xff]
          %136 = vst [vmem:[%s46 + $0x160] sm:$0xff] %v135
          %v137 = vld [vmem:[%s45 + $0x168] sm:$0xff]
          %138 = vst [vmem:[%s46 + $0x168] sm:$0xff] %v137
          %v139 = vld [vmem:[%s45 + $0x170] sm:$0xff]
          %140 = vst [vmem:[%s46 + $0x170] sm:$0xff] %v139
          %v141 = vld [vmem:[%s45 + $0x178] sm:$0xff]
          %142 = vst [vmem:[%s46 + $0x178] sm:$0xff] %v141
          %v143 = vld [vmem:[%s45 + $0x180] sm:$0xff]
          %144 = vst [vmem:[%s46 + $0x180] sm:$0xff] %v143
          %v145 = vld [vmem:[%s45 + $0x188] sm:$0xff]
          %146 = vst [vmem:[%s46 + $0x188] sm:$0xff] %v145
          %v147 = vld [vmem:[%s45 + $0x190] sm:$0xff]
          %148 = vst [vmem:[%s46 + $0x190] sm:$0xff] %v147
          %v149 = vld [vmem:[%s45 + $0x198] sm:$0xff]
          %150 = vst [vmem:[%s46 + $0x198] sm:$0xff] %v149
          %v151 = vld [vmem:[%s45 + $0x1a0] sm:$0xff]
          %152 = vst [vmem:[%s46 + $0x1a0] sm:$0xff] %v151
          %v153 = vld [vmem:[%s45 + $0x1a8] sm:$0xff]
          %154 = vst [vmem:[%s46 + $0x1a8] sm:$0xff] %v153
          %v155 = vld [vmem:[%s45 + $0x1b0] sm:$0xff]
          %156 = vst [vmem:[%s46 + $0x1b0] sm:$0xff] %v155
          %v157 = vld [vmem:[%s45 + $0x1b8] sm:$0xff]
          %158 = vst [vmem:[%s46 + $0x1b8] sm:$0xff] %v157
          %v159 = vld [vmem:[%s45 + $0x1c0] sm:$0xff]
          %160 = vst [vmem:[%s46 + $0x1c0] sm:$0xff] %v159
          %v161 = vld [vmem:[%s45 + $0x1c8] sm:$0xff]
          %162 = vst [vmem:[%s46 + $0x1c8] sm:$0xff] %v161
          %v163 = vld [vmem:[%s45 + $0x1d0] sm:$0xff]
          %164 = vst [vmem:[%s46 + $0x1d0] sm:$0xff] %v163
          %v165 = vld [vmem:[%s45 + $0x1d8] sm:$0xff]
          %166 = vst [vmem:[%s46 + $0x1d8] sm:$0xff] %v165
          %v167 = vld [vmem:[%s45 + $0x1e0] sm:$0xff]
          %168 = vst [vmem:[%s46 + $0x1e0] sm:$0xff] %v167
          %v169 = vld [vmem:[%s45 + $0x1e8] sm:$0xff]
          %170 = vst [vmem:[%s46 + $0x1e8] sm:$0xff] %v169
          %v171 = vld [vmem:[%s45 + $0x1f0] sm:$0xff]
          %172 = vst [vmem:[%s46 + $0x1f0] sm:$0xff] %v171
          %v173 = vld [vmem:[%s45 + $0x1f8] sm:$0xff]
          %174 = vst [vmem:[%s46 + $0x1f8] sm:$0xff] %v173
        $region33: #{lstm_pallas.1} parent=27 // loop_footer
          %s44 = sadd.s32 1, %s40
        $region34: #{lstm_pallas.1} parent=27 // loop_footer_branch
          %39 = sbr.rel target = $region30
        $region35: #{lstm_pallas.1} parent=27 // loop_exit
          _
      $region28: #{lstm_pallas.1} parent=12 // pred_fallthru
        _
      %p175 = pneg %p35
      // Predicated region
      $region36: #{lstm_pallas.1} parent=12 // pred_check
        _
      $region37: #{lstm_pallas.1} parent=12 // pred_check_branch
        %177 = sbr.rel (%p35) target = $region39
      $region38: #{lstm_pallas.1} parent=12 // pred_region
        %s178 = sand.u32 512, 7
      $region39: #{lstm_pallas.1} parent=12 // pred_fallthru
        _
    $region13: #{lstm_pallas.1} parent=8 // pred_fallthru
      _
    // Predicated region
    $region14: #{lstm_pallas.1} parent=8 // pred_check
      %p20 = pneg %p16
    $region15: #{lstm_pallas.1} parent=8 // pred_check_branch
      %22 = sbr.rel (%p20) target = $region17
    $region16: #{lstm_pallas.1} parent=8 // pred_region
      %s23 = sshllo.u32 0, 512
      loop: start=0, step=1, limit=1
      $region18: #{lstm_pallas.1} parent=16 // loop_pre_header
        _
      $region19: #{lstm_pallas.1} parent=16 // loop_header
        %s25 = sphi 0, %s29
        %p26 = scmp.ge.s32.totalorder %s25, 1
        %s30 = sphi %s1, %s1
        %s31 = sphi [#allocation2], [#allocation2]
      $region20: #{lstm_pallas.1} parent=16 // loop_header_branch
        %28 = sbr.rel (%p26) target = $region24
      $region21: #{lstm_pallas.1} parent=16 // loop_body
        %v32 = vld [vmem:[%s30] sm:%s23]
        %33 = vst [vmem:[%s31] sm:%s23] %v32
      $region22: #{lstm_pallas.1} parent=16 // loop_footer
        %s29 = sadd.s32 1, %s25
      $region23: #{lstm_pallas.1} parent=16 // loop_footer_branch
        %24 = sbr.rel target = $region19
      $region24: #{lstm_pallas.1} parent=16 // loop_exit
        _
    $region17: #{lstm_pallas.1} parent=8 // pred_fallthru
      _
    // Predicated region
    $region40: #{lstm_pallas.1} parent=8 // pred_check
      _
    $region41: #{lstm_pallas.1} parent=8 // pred_check_branch
      %181 = sbr.rel (0) target = $region43
    $region42: #{lstm_pallas.1} parent=8 // pred_region
      %182 = vsyncadd [#allocation3], 8192
    $region43: #{lstm_pallas.1} parent=8 // pred_fallthru
      _
    %s183 = smul.u32 8, 16
    %s184 = smul.u32 %s183, 4
    %s185 = sshll.u32 %s184, 4
    %186 = dma.done [#allocation3], %s185
    %187 = vst [vmem:[#allocation4] sm:$0xff] 0.0
    %188 = vst [vmem:[#allocation5] sm:$0xff] 0.0
  $region9: #{lstm_pallas.1} parent=0 // pred_fallthru
    _
  %v189 = vld [vmem:[#allocation2] sm:$0xff]
  %v190 = vld [vmem:[#allocation2 + $0x8] sm:$0xff]
  %v191 = vld [vmem:[#allocation2 + $0x10] sm:$0xff]
  %v192 = vld [vmem:[#allocation2 + $0x18] sm:$0xff]
  %v193 = vld [vmem:[#allocation2 + $0x20] sm:$0xff]
  %v194 = vld [vmem:[#allocation2 + $0x28] sm:$0xff]
  %v195 = vld [vmem:[#allocation2 + $0x30] sm:$0xff]
  %v196 = vld [vmem:[#allocation2 + $0x38] sm:$0xff]
  %v197 = vld [vmem:[#allocation2 + $0x40] sm:$0xff]
  %v198 = vld [vmem:[#allocation2 + $0x48] sm:$0xff]
  %v199 = vld [vmem:[#allocation2 + $0x50] sm:$0xff]
  %v200 = vld [vmem:[#allocation2 + $0x58] sm:$0xff]
  %v201 = vld [vmem:[#allocation2 + $0x60] sm:$0xff]
  %v202 = vld [vmem:[#allocation2 + $0x68] sm:$0xff]
  %v203 = vld [vmem:[#allocation2 + $0x70] sm:$0xff]
  %v204 = vld [vmem:[#allocation2 + $0x78] sm:$0xff]
  %v205 = vld [vmem:[#allocation2 + $0x80] sm:$0xff]
  %v206 = vld [vmem:[#allocation2 + $0x88] sm:$0xff]
  %v207 = vld [vmem:[#allocation2 + $0x90] sm:$0xff]
  %v208 = vld [vmem:[#allocation2 + $0x98] sm:$0xff]
  %v209 = vld [vmem:[#allocation2 + $0xa0] sm:$0xff]
  %v210 = vld [vmem:[#allocation2 + $0xa8] sm:$0xff]
  %v211 = vld [vmem:[#allocation2 + $0xb0] sm:$0xff]
  %v212 = vld [vmem:[#allocation2 + $0xb8] sm:$0xff]
  %v213 = vld [vmem:[#allocation2 + $0xc0] sm:$0xff]
  %v214 = vld [vmem:[#allocation2 + $0xc8] sm:$0xff]
  %v215 = vld [vmem:[#allocation2 + $0xd0] sm:$0xff]
  %v216 = vld [vmem:[#allocation2 + $0xd8] sm:$0xff]
  %v217 = vld [vmem:[#allocation2 + $0xe0] sm:$0xff]
  %v218 = vld [vmem:[#allocation2 + $0xe8] sm:$0xff]
  %v219 = vld [vmem:[#allocation2 + $0xf0] sm:$0xff]
  %v220 = vld [vmem:[#allocation2 + $0xf8] sm:$0xff]
  %v221 = vld [vmem:[#allocation2 + $0x100] sm:$0xff]
  %v222 = vld [vmem:[#allocation2 + $0x108] sm:$0xff]
  %v223 = vld [vmem:[#allocation2 + $0x110] sm:$0xff]
  %v224 = vld [vmem:[#allocation2 + $0x118] sm:$0xff]
  %v225 = vld [vmem:[#allocation2 + $0x120] sm:$0xff]
  %v226 = vld [vmem:[#allocation2 + $0x128] sm:$0xff]
  %v227 = vld [vmem:[#allocation2 + $0x130] sm:$0xff]
  %v228 = vld [vmem:[#allocation2 + $0x138] sm:$0xff]
  %v229 = vld [vmem:[#allocation2 + $0x140] sm:$0xff]
  %v230 = vld [vmem:[#allocation2 + $0x148] sm:$0xff]
  %v231 = vld [vmem:[#allocation2 + $0x150] sm:$0xff]
  %v232 = vld [vmem:[#allocation2 + $0x158] sm:$0xff]
  %v233 = vld [vmem:[#allocation2 + $0x160] sm:$0xff]
  %v234 = vld [vmem:[#allocation2 + $0x168] sm:$0xff]
  %v235 = vld [vmem:[#allocation2 + $0x170] sm:$0xff]
  %v236 = vld [vmem:[#allocation2 + $0x178] sm:$0xff]
  %v237 = vld [vmem:[#allocation2 + $0x180] sm:$0xff]
  %v238 = vld [vmem:[#allocation2 + $0x188] sm:$0xff]
  %v239 = vld [vmem:[#allocation2 + $0x190] sm:$0xff]
  %v240 = vld [vmem:[#allocation2 + $0x198] sm:$0xff]
  %v241 = vld [vmem:[#allocation2 + $0x1a0] sm:$0xff]
  %v242 = vld [vmem:[#allocation2 + $0x1a8] sm:$0xff]
  %v243 = vld [vmem:[#allocation2 + $0x1b0] sm:$0xff]
  %v244 = vld [vmem:[#allocation2 + $0x1b8] sm:$0xff]
  %v245 = vld [vmem:[#allocation2 + $0x1c0] sm:$0xff]
  %v246 = vld [vmem:[#allocation2 + $0x1c8] sm:$0xff]
  %v247 = vld [vmem:[#allocation2 + $0x1d0] sm:$0xff]
  %v248 = vld [vmem:[#allocation2 + $0x1d8] sm:$0xff]
  %v249 = vld [vmem:[#allocation2 + $0x1e0] sm:$0xff]
  %v250 = vld [vmem:[#allocation2 + $0x1e8] sm:$0xff]
  %v251 = vld [vmem:[#allocation2 + $0x1f0] sm:$0xff]
  %v252 = vld [vmem:[#allocation2 + $0x1f8] sm:$0xff]
  %v253 = vld [vmem:[#allocation4] sm:$0xff]
  %v254 = vld [vmem:[#allocation5] sm:$0xff]
  %v255 = vld [vmem:[%s0] sm:$0xff]
  %v256 = vld [vmem:[%s0 + $0x8] sm:$0xff]
  %v257 = vld [vmem:[%s0 + $0x10] sm:$0xff]
  %v258 = vld [vmem:[%s0 + $0x18] sm:$0xff]
  %259 = vmatprep.subr.mxu0 %v190
  %260 = vmatpush1.msra.mxu0 %v189
  %261 = vmatprep.subr.mxu0 %v194
  %262 = vmatpush1.msra.mxu0 %v193
  %263 = vmatprep.subr.mxu0 %v198
  %264 = vmatpush1.msra.mxu0 %v197
  %265 = vmatprep.subr.mxu0 %v202
  %266 = vmatpush1.msra.mxu0 %v201
  %267 = vmatprep.subr.mxu0 %v206
  %268 = vmatpush1.msra.mxu0 %v205
  %269 = vmatprep.subr.mxu0 %v210
  %270 = vmatpush1.msra.mxu0 %v209
  %271 = vmatprep.subr.mxu0 %v214
  %272 = vmatpush1.msra.mxu0 %v213
  %273 = vmatprep.subr.mxu0 %v218
  %274 = vmatpush1.msra.mxu0 %v217
  %275 = vmatprep.subr.mxu0 %v222
  %276 = vmatpush1.msra.mxu0 %v221
  %277 = vmatprep.subr.mxu0 %v226
  %278 = vmatpush1.msra.mxu0 %v225
  %279 = vmatprep.subr.mxu0 %v230
  %280 = vmatpush1.msra.mxu0 %v229
  %281 = vmatprep.subr.mxu0 %v234
  %282 = vmatpush1.msra.mxu0 %v233
  %283 = vmatprep.subr.mxu0 %v238
  %284 = vmatpush1.msra.mxu0 %v237
  %285 = vmatprep.subr.mxu0 %v242
  %286 = vmatpush1.msra.mxu0 %v241
  %287 = vmatprep.subr.mxu0 %v246
  %288 = vmatpush1.msra.mxu0 %v245
  %289 = vmatprep.subr.mxu0 %v250
  %290 = vmatpush1.msra.mxu0 %v249
  %291 = vmatprep.subr.mxu0 0.0
  %292 = vmatpush1.msra.mxu0 0.0
  %293 = vmatprep.subr.mxu0 0.0
  %294 = vmatpush1.msra.mxu0 0.0
  %295 = vmatprep.subr.mxu0 0.0
  %296 = vmatpush1.msra.mxu0 0.0
  %297 = vmatprep.subr.mxu0 0.0
  %298 = vmatpush1.msra.mxu0 0.0
  %299 = vmatprep.subr.mxu0 0.0
  %300 = vmatpush1.msra.mxu0 0.0
  %301 = vmatprep.subr.mxu0 0.0
  %302 = vmatpush1.msra.mxu0 0.0
  %303 = vmatprep.subr.mxu0 0.0
  %304 = vmatpush1.msra.mxu0 0.0
  %305 = vmatprep.subr.mxu0 0.0
  %306 = vmatpush1.msra.mxu0 0.0
  %307 = vmatprep.subr.mxu0 0.0
  %308 = vmatpush1.msra.mxu0 0.0
  %309 = vmatprep.subr.mxu0 0.0
  %310 = vmatpush1.msra.mxu0 0.0
  %311 = vmatprep.subr.mxu0 0.0
  %312 = vmatpush1.msra.mxu0 0.0
  %313 = vmatprep.subr.mxu0 0.0
  %314 = vmatpush1.msra.mxu0 0.0
  %315 = vmatprep.subr.mxu0 0.0
  %316 = vmatpush1.msra.mxu0 0.0
  %317 = vmatprep.subr.mxu0 0.0
  %318 = vmatpush1.msra.mxu0 0.0
  %319 = vmatprep.subr.mxu0 0.0
  %320 = vmatpush1.msra.mxu0 0.0
  %321 = vmatprep.subr.mxu0 0.0
  %322 = vmatpush1.msra.mxu0 0.0
  %323 = vmatprep.mubr.f32.mxu0 0.0
  %324 = vmatmul.mubr.f32.gmra.mrb[0].mxu0 %v253
  %v325 = vpop.f32.mrb[0].mxu0
  %v326 = vadd.f32 0.0, %v325
  %v327 = vpop.f32.mrb[0].mxu0
  %v328 = vadd.f32 0.0, %v327
  %329 = vdwg.mxu0
  %330 = vmatprep.subr.mxu0 %v192
  %331 = vmatpush1.msra.mxu0 %v191
  %332 = vmatprep.subr.mxu0 %v196
  %333 = vmatpush1.msra.mxu0 %v195
  %334 = vmatprep.subr.mxu0 %v200
  %335 = vmatpush1.msra.mxu0 %v199
  %336 = vmatprep.subr.mxu0 %v204
  %337 = vmatpush1.msra.mxu0 %v203
  %338 = vmatprep.subr.mxu0 %v208
  %339 = vmatpush1.msra.mxu0 %v207
  %340 = vmatprep.subr.mxu0 %v212
  %341 = vmatpush1.msra.mxu0 %v211
  %342 = vmatprep.subr.mxu0 %v216
  %343 = vmatpush1.msra.mxu0 %v215
  %344 = vmatprep.subr.mxu0 %v220
  %345 = vmatpush1.msra.mxu0 %v219
  %346 = vmatprep.subr.mxu0 %v224
  %347 = vmatpush1.msra.mxu0 %v223
  %348 = vmatprep.subr.mxu0 %v228
  %349 = vmatpush1.msra.mxu0 %v227
  %350 = vmatprep.subr.mxu0 %v232
  %351 = vmatpush1.msra.mxu0 %v231
  %352 = vmatprep.subr.mxu0 %v236
  %353 = vmatpush1.msra.mxu0 %v235
  %354 = vmatprep.subr.mxu0 %v240
  %355 = vmatpush1.msra.mxu0 %v239
  %356 = vmatprep.subr.mxu0 %v244
  %357 = vmatpush1.msra.mxu0 %v243
  %358 = vmatprep.subr.mxu0 %v248
  %359 = vmatpush1.msra.mxu0 %v247
  %360 = vmatprep.subr.mxu0 %v252
  %361 = vmatpush1.msra.mxu0 %v251
  %362 = vmatprep.subr.mxu0 0.0
  %363 = vmatpush1.msra.mxu0 0.0
  %364 = vmatprep.subr.mxu0 0.0
  %365 = vmatpush1.msra.mxu0 0.0
  %366 = vmatprep.subr.mxu0 0.0
  %367 = vmatpush1.msra.mxu0 0.0
  %368 = vmatprep.subr.mxu0 0.0
  %369 = vmatpush1.msra.mxu0 0.0
  %370 = vmatprep.subr.mxu0 0.0
  %371 = vmatpush1.msra.mxu0 0.0
  %372 = vmatprep.subr.mxu0 0.0
  %373 = vmatpush1.msra.mxu0 0.0
  %374 = vmatprep.subr.mxu0 0.0
  %375 = vmatpush1.msra.mxu0 0.0
  %376 = vmatprep.subr.mxu0 0.0
  %377 = vmatpush1.msra.mxu0 0.0
  %378 = vmatprep.subr.mxu0 0.0
  %379 = vmatpush1.msra.mxu0 0.0
  %380 = vmatprep.subr.mxu0 0.0
  %381 = vmatpush1.msra.mxu0 0.0
  %382 = vmatprep.subr.mxu0 0.0
  %383 = vmatpush1.msra.mxu0 0.0
  %384 = vmatprep.subr.mxu0 0.0
  %385 = vmatpush1.msra.mxu0 0.0
  %386 = vmatprep.subr.mxu0 0.0
  %387 = vmatpush1.msra.mxu0 0.0
  %388 = vmatprep.subr.mxu0 0.0
  %389 = vmatpush1.msra.mxu0 0.0
  %390 = vmatprep.subr.mxu0 0.0
  %391 = vmatpush1.msra.mxu0 0.0
  %392 = vmatprep.subr.mxu0 0.0
  %393 = vmatpush1.msra.mxu0 0.0
  %394 = vmatprep.mubr.f32.mxu0 0.0
  %395 = vmatmul.mubr.f32.gmra.mrb[0].mxu0 %v253
  %v396 = vpop.f32.mrb[0].mxu0
  %v397 = vadd.f32 0.0, %v396
  %v398 = vpop.f32.mrb[0].mxu0
  %v399 = vadd.f32 0.0, %v398
  %400 = vdwg.mxu0
  %v401 = vadd.f32 %v255, %v326
  %v402 = vadd.f32 %v256, %v328
  %v403 = vadd.f32 %v257, %v397
  %v404 = vadd.f32 %v258, %v399
  %v405 = vmul.f32 %v401, 0.5
  %v406 = vtanh.pop %v405
  %v407 = vmul.f32 %v406, 0.5
  %v408 = vadd.f32 %v407, 0.5
  %v409 = vmul.f32 %v402, 0.5
  %v410 = vtanh.pop %v409
  %v411 = vmul.f32 %v410, 0.5
  %v412 = vadd.f32 %v411, 0.5
  %v413 = vtanh.pop %v403
  %v414 = vmul.f32 %v404, 0.5
  %v415 = vtanh.pop %v414
  %v416 = vmul.f32 %v415, 0.5
  %v417 = vadd.f32 %v416, 0.5
  %v418 = vmul.f32 %v412, %v254
  %v419 = vmul.f32 %v408, %v413
  %v420 = vadd.f32 %v418, %v419
  %v421 = vtanh.pop %v420
  %v422 = vmul.f32 %v417, %v421
  %423 = vst [vmem:[%s2] sm:$0xff] %v422
  %424 = vst [vmem:[%s3] sm:$0xff] %v420
  %s425 = scalar_lea.vmem %s0, 32
  %v426 = vld [vmem:[%s425] sm:$0xff]
  %v427 = vld [vmem:[%s425 + $0x8] sm:$0xff]
  %v428 = vld [vmem:[%s425 + $0x10] sm:$0xff]
  %v429 = vld [vmem:[%s425 + $0x18] sm:$0xff]
  %430 = vmatprep.subr.mxu0 %v190
  %431 = vmatpush1.msra.mxu0 %v189
  %432 = vmatprep.subr.mxu0 %v194
  %433 = vmatpush1.msra.mxu0 %v193
  %434 = vmatprep.subr.mxu0 %v198
  %435 = vmatpush1.msra.mxu0 %v197
  %436 = vmatprep.subr.mxu0 %v202
  %437 = vmatpush1.msra.mxu0 %v201
  %438 = vmatprep.subr.mxu0 %v206
  %439 = vmatpush1.msra.mxu0 %v205
  %440 = vmatprep.subr.mxu0 %v210
  %441 = vmatpush1.msra.mxu0 %v209
  %442 = vmatprep.subr.mxu0 %v214
  %443 = vmatpush1.msra.mxu0 %v213
  %444 = vmatprep.subr.mxu0 %v218
  %445 = vmatpush1.msra.mxu0 %v217
  %446 = vmatprep.subr.mxu0 %v222
  %447 = vmatpush1.msra.mxu0 %v221
  %448 = vmatprep.subr.mxu0 %v226
  %449 = vmatpush1.msra.mxu0 %v225
  %450 = vmatprep.subr.mxu0 %v230
  %451 = vmatpush1.msra.mxu0 %v229
  %452 = vmatprep.subr.mxu0 %v234
  %453 = vmatpush1.msra.mxu0 %v233
  %454 = vmatprep.subr.mxu0 %v238
  %455 = vmatpush1.msra.mxu0 %v237
  %456 = vmatprep.subr.mxu0 %v242
  %457 = vmatpush1.msra.mxu0 %v241
  %458 = vmatprep.subr.mxu0 %v246
  %459 = vmatpush1.msra.mxu0 %v245
  %460 = vmatprep.subr.mxu0 %v250
  %461 = vmatpush1.msra.mxu0 %v249
  %462 = vmatprep.subr.mxu0 0.0
  %463 = vmatpush1.msra.mxu0 0.0
  %464 = vmatprep.subr.mxu0 0.0
  %465 = vmatpush1.msra.mxu0 0.0
  %466 = vmatprep.subr.mxu0 0.0
  %467 = vmatpush1.msra.mxu0 0.0
  %468 = vmatprep.subr.mxu0 0.0
  %469 = vmatpush1.msra.mxu0 0.0
  %470 = vmatprep.subr.mxu0 0.0
  %471 = vmatpush1.msra.mxu0 0.0
  %472 = vmatprep.subr.mxu0 0.0
  %473 = vmatpush1.msra.mxu0 0.0
  %474 = vmatprep.subr.mxu0 0.0
  %475 = vmatpush1.msra.mxu0 0.0
  %476 = vmatprep.subr.mxu0 0.0
  %477 = vmatpush1.msra.mxu0 0.0
  %478 = vmatprep.subr.mxu0 0.0
  %479 = vmatpush1.msra.mxu0 0.0
  %480 = vmatprep.subr.mxu0 0.0
  %481 = vmatpush1.msra.mxu0 0.0
  %482 = vmatprep.subr.mxu0 0.0
  %483 = vmatpush1.msra.mxu0 0.0
  %484 = vmatprep.subr.mxu0 0.0
  %485 = vmatpush1.msra.mxu0 0.0
  %486 = vmatprep.subr.mxu0 0.0
  %487 = vmatpush1.msra.mxu0 0.0
  %488 = vmatprep.subr.mxu0 0.0
  %489 = vmatpush1.msra.mxu0 0.0
  %490 = vmatprep.subr.mxu0 0.0
  %491 = vmatpush1.msra.mxu0 0.0
  %492 = vmatprep.subr.mxu0 0.0
  %493 = vmatpush1.msra.mxu0 0.0
  %494 = vmatprep.mubr.f32.mxu0 0.0
  %495 = vmatmul.mubr.f32.gmra.mrb[0].mxu0 %v422
  %v496 = vpop.f32.mrb[0].mxu0
  %v497 = vadd.f32 0.0, %v496
  %v498 = vpop.f32.mrb[0].mxu0
  %v499 = vadd.f32 0.0, %v498
  %500 = vdwg.mxu0
  %501 = vmatprep.subr.mxu0 %v192
  %502 = vmatpush1.msra.mxu0 %v191
  %503 = vmatprep.subr.mxu0 %v196
  %504 = vmatpush1.msra.mxu0 %v195
  %505 = vmatprep.subr.mxu0 %v200
  %506 = vmatpush1.msra.mxu0 %v199
  %507 = vmatprep.subr.mxu0 %v204
  %508 = vmatpush1.msra.mxu0 %v203
  %509 = vmatprep.subr.mxu0 %v208
  %510 = vmatpush1.msra.mxu0 %v207
  %511 = vmatprep.subr.mxu0 %v212
  %512 = vmatpush1.msra.mxu0 %v211
  %513 = vmatprep.subr.mxu0 %v216
  %514 = vmatpush1.msra.mxu0 %v215
  %515 = vmatprep.subr.mxu0 %v220
  %516 = vmatpush1.msra.mxu0 %v219
  %517 = vmatprep.subr.mxu0 %v224
  %518 = vmatpush1.msra.mxu0 %v223
  %519 = vmatprep.subr.mxu0 %v228
  %520 = vmatpush1.msra.mxu0 %v227
  %521 = vmatprep.subr.mxu0 %v232
  %522 = vmatpush1.msra.mxu0 %v231
  %523 = vmatprep.subr.mxu0 %v236
  %524 = vmatpush1.msra.mxu0 %v235
  %525 = vmatprep.subr.mxu0 %v240
  %526 = vmatpush1.msra.mxu0 %v239
  %527 = vmatprep.subr.mxu0 %v244
  %528 = vmatpush1.msra.mxu0 %v243
  %529 = vmatprep.subr.mxu0 %v248
  %530 = vmatpush1.msra.mxu0 %v247
  %531 = vmatprep.subr.mxu0 %v252
  %532 = vmatpush1.msra.mxu0 %v251
  %533 = vmatprep.subr.mxu0 0.0
  %534 = vmatpush1.msra.mxu0 0.0
  %535 = vmatprep.subr.mxu0 0.0
  %536 = vmatpush1.msra.mxu0 0.0
  %537 = vmatprep.subr.mxu0 0.0
  %538 = vmatpush1.msra.mxu0 0.0
  %539 = vmatprep.subr.mxu0 0.0
  %540 = vmatpush1.msra.mxu0 0.0
  %541 = vmatprep.subr.mxu0 0.0
  %542 = vmatpush1.msra.mxu0 0.0
  %543 = vmatprep.subr.mxu0 0.0
  %544 = vmatpush1.msra.mxu0 0.0
  %545 = vmatprep.subr.mxu0 0.0
  %546 = vmatpush1.msra.mxu0 0.0
  %547 = vmatprep.subr.mxu0 0.0
  %548 = vmatpush1.msra.mxu0 0.0
  %549 = vmatprep.subr.mxu0 0.0
  %550 = vmatpush1.msra.mxu0 0.0
  %551 = vmatprep.subr.mxu0 0.0
  %552 = vmatpush1.msra.mxu0 0.0
  %553 = vmatprep.subr.mxu0 0.0
  %554 = vmatpush1.msra.mxu0 0.0
  %555 = vmatprep.subr.mxu0 0.0
  %556 = vmatpush1.msra.mxu0 0.0
  %557 = vmatprep.subr.mxu0 0.0
  %558 = vmatpush1.msra.mxu0 0.0
  %559 = vmatprep.subr.mxu0 0.0
  %560 = vmatpush1.msra.mxu0 0.0
  %561 = vmatprep.subr.mxu0 0.0
  %562 = vmatpush1.msra.mxu0 0.0
  %563 = vmatprep.subr.mxu0 0.0
  %564 = vmatpush1.msra.mxu0 0.0
  %565 = vmatprep.mubr.f32.mxu0 0.0
  %566 = vmatmul.mubr.f32.gmra.mrb[0].mxu0 %v422
  %v567 = vpop.f32.mrb[0].mxu0
  %v568 = vadd.f32 0.0, %v567
  %v569 = vpop.f32.mrb[0].mxu0
  %v570 = vadd.f32 0.0, %v569
  %571 = vdwg.mxu0
  %v572 = vadd.f32 %v426, %v497
  %v573 = vadd.f32 %v427, %v499
  %v574 = vadd.f32 %v428, %v568
  %v575 = vadd.f32 %v429, %v570
  %v576 = vmul.f32 %v572, 0.5
  %v577 = vtanh.pop %v576
  %v578 = vmul.f32 %v577, 0.5
  %v579 = vadd.f32 %v578, 0.5
  %v580 = vmul.f32 %v573, 0.5
  %v581 = vtanh.pop %v580
  %v582 = vmul.f32 %v581, 0.5
  %v583 = vadd.f32 %v582, 0.5
  %v584 = vtanh.pop %v574
  %v585 = vmul.f32 %v575, 0.5
  %v586 = vtanh.pop %v585
  %v587 = vmul.f32 %v586, 0.5
  %v588 = vadd.f32 %v587, 0.5
  %v589 = vmul.f32 %v583, %v420
  %v590 = vmul.f32 %v579, %v584
  %v591 = vadd.f32 %v589, %v590
  %v592 = vtanh.pop %v591
  %v593 = vmul.f32 %v588, %v592
  %s594 = scalar_lea.vmem %s2, 8
  %595 = vst [vmem:[%s594] sm:$0xff] %v593
  %s596 = scalar_lea.vmem %s3, 8
  %597 = vst [vmem:[%s596] sm:$0xff] %v591
  %s598 = scalar_lea.vmem %s0, 64
  %v599 = vld [vmem:[%s598] sm:$0xff]
  %v600 = vld [vmem:[%s598 + $0x8] sm:$0xff]
  %v601 = vld [vmem:[%s598 + $0x10] sm:$0xff]
  %v602 = vld [vmem:[%s598 + $0x18] sm:$0xff]
  %603 = vmatprep.subr.mxu0 %v190
  %604 = vmatpush1.msra.mxu0 %v189
  %605 = vmatprep.subr.mxu0 %v194
  %606 = vmatpush1.msra.mxu0 %v193
  %607 = vmatprep.subr.mxu0 %v198
  %608 = vmatpush1.msra.mxu0 %v197
  %609 = vmatprep.subr.mxu0 %v202
  %610 = vmatpush1.msra.mxu0 %v201
  %611 = vmatprep.subr.mxu0 %v206
  %612 = vmatpush1.msra.mxu0 %v205
  %613 = vmatprep.subr.mxu0 %v210
  %614 = vmatpush1.msra.mxu0 %v209
  %615 = vmatprep.subr.mxu0 %v214
  %616 = vmatpush1.msra.mxu0 %v213
  %617 = vmatprep.subr.mxu0 %v218
  %618 = vmatpush1.msra.mxu0 %v217
  %619 = vmatprep.subr.mxu0 %v222
  %620 = vmatpush1.msra.mxu0 %v221
  %621 = vmatprep.subr.mxu0 %v226
  %622 = vmatpush1.msra.mxu0 %v225
  %623 = vmatprep.subr.mxu0 %v230
  %624 = vmatpush1.msra.mxu0 %v229
  %625 = vmatprep.subr.mxu0 %v234
  %626 = vmatpush1.msra.mxu0 %v233
  %627 = vmatprep.subr.mxu0 %v238
  %628 = vmatpush1.msra.mxu0 %v237
  %629 = vmatprep.subr.mxu0 %v242
  %630 = vmatpush1.msra.mxu0 %v241
  %631 = vmatprep.subr.mxu0 %v246
  %632 = vmatpush1.msra.mxu0 %v245
  %633 = vmatprep.subr.mxu0 %v250
  %634 = vmatpush1.msra.mxu0 %v249
  %635 = vmatprep.subr.mxu0 0.0
  %636 = vmatpush1.msra.mxu0 0.0
  %637 = vmatprep.subr.mxu0 0.0
  %638 = vmatpush1.msra.mxu0 0.0
  %639 = vmatprep.subr.mxu0 0.0
  %640 = vmatpush1.msra.mxu0 0.0
  %641 = vmatprep.subr.mxu0 0.0
  %642 = vmatpush1.msra.mxu0 0.0
  %643 = vmatprep.subr.mxu0 0.0
  %644 = vmatpush1.msra.mxu0 0.0
  %645 = vmatprep.subr.mxu0 0.0
  %646 = vmatpush1.msra.mxu0 0.0
  %647 = vmatprep.subr.mxu0 0.0
  %648 = vmatpush1.msra.mxu0 0.0
  %649 = vmatprep.subr.mxu0 0.0
  %650 = vmatpush1.msra.mxu0 0.0
  %651 = vmatprep.subr.mxu0 0.0
  %652 = vmatpush1.msra.mxu0 0.0
  %653 = vmatprep.subr.mxu0 0.0
  %654 = vmatpush1.msra.mxu0 0.0
  %655 = vmatprep.subr.mxu0 0.0
  %656 = vmatpush1.msra.mxu0 0.0
  %657 = vmatprep.subr.mxu0 0.0
  %658 = vmatpush1.msra.mxu0 0.0
  %659 = vmatprep.subr.mxu0 0.0
  %660 = vmatpush1.msra.mxu0 0.0
  %661 = vmatprep.subr.mxu0 0.0
  %662 = vmatpush1.msra.mxu0 0.0
  %663 = vmatprep.subr.mxu0 0.0
  %664 = vmatpush1.msra.mxu0 0.0
  %665 = vmatprep.subr.mxu0 0.0
  %666 = vmatpush1.msra.mxu0 0.0
  %667 = vmatprep.mubr.f32.mxu0 0.0
  %668 = vmatmul.mubr.f32.gmra.mrb[0].mxu0 %v593
  %v669 = vpop.f32.mrb[0].mxu0
  %v670 = vadd.f32 0.0, %v669
  %v671 = vpop.f32.mrb[0].mxu0
  %v672 = vadd.f32 0.0, %v671
  %673 = vdwg.mxu0
  %674 = vmatprep.subr.mxu0 %v192
  %675 = vmatpush1.msra.mxu0 %v191
  %676 = vmatprep.subr.mxu0 %v196
  %677 = vmatpush1.msra.mxu0 %v195
  %678 = vmatprep.subr.mxu0 %v200
  %679 = vmatpush1.msra.mxu0 %v199
  %680 = vmatprep.subr.mxu0 %v204
  %681 = vmatpush1.msra.mxu0 %v203
  %682 = vmatprep.subr.mxu0 %v208
  %683 = vmatpush1.msra.mxu0 %v207
  %684 = vmatprep.subr.mxu0 %v212
  %685 = vmatpush1.msra.mxu0 %v211
  %686 = vmatprep.subr.mxu0 %v216
  %687 = vmatpush1.msra.mxu0 %v215
  %688 = vmatprep.subr.mxu0 %v220
  %689 = vmatpush1.msra.mxu0 %v219
  %690 = vmatprep.subr.mxu0 %v224
  %691 = vmatpush1.msra.mxu0 %v223
  %692 = vmatprep.subr.mxu0 %v228
  %693 = vmatpush1.msra.mxu0 %v227
  %694 = vmatprep.subr.mxu0 %v232
  %695 = vmatpush1.msra.mxu0 %v231
  %696 = vmatprep.subr.mxu0 %v236
  %697 = vmatpush1.msra.mxu0 %v235
  %698 = vmatprep.subr.mxu0 %v240
  %699 = vmatpush1.msra.mxu0 %v239
  %700 = vmatprep.subr.mxu0 %v244
  %701 = vmatpush1.msra.mxu0 %v243
  %702 = vmatprep.subr.mxu0 %v248
  %703 = vmatpush1.msra.mxu0 %v247
  %704 = vmatprep.subr.mxu0 %v252
  %705 = vmatpush1.msra.mxu0 %v251
  %706 = vmatprep.subr.mxu0 0.0
  %707 = vmatpush1.msra.mxu0 0.0
  %708 = vmatprep.subr.mxu0 0.0
  %709 = vmatpush1.msra.mxu0 0.0
  %710 = vmatprep.subr.mxu0 0.0
  %711 = vmatpush1.msra.mxu0 0.0
  %712 = vmatprep.subr.mxu0 0.0
  %713 = vmatpush1.msra.mxu0 0.0
  %714 = vmatprep.subr.mxu0 0.0
  %715 = vmatpush1.msra.mxu0 0.0
  %716 = vmatprep.subr.mxu0 0.0
  %717 = vmatpush1.msra.mxu0 0.0
  %718 = vmatprep.subr.mxu0 0.0
  %719 = vmatpush1.msra.mxu0 0.0
  %720 = vmatprep.subr.mxu0 0.0
  %721 = vmatpush1.msra.mxu0 0.0
  %722 = vmatprep.subr.mxu0 0.0
  %723 = vmatpush1.msra.mxu0 0.0
  %724 = vmatprep.subr.mxu0 0.0
  %725 = vmatpush1.msra.mxu0 0.0
  %726 = vmatprep.subr.mxu0 0.0
  %727 = vmatpush1.msra.mxu0 0.0
  %728 = vmatprep.subr.mxu0 0.0
  %729 = vmatpush1.msra.mxu0 0.0
  %730 = vmatprep.subr.mxu0 0.0
  %731 = vmatpush1.msra.mxu0 0.0
  %732 = vmatprep.subr.mxu0 0.0
  %733 = vmatpush1.msra.mxu0 0.0
  %734 = vmatprep.subr.mxu0 0.0
  %735 = vmatpush1.msra.mxu0 0.0
  %736 = vmatprep.subr.mxu0 0.0
  %737 = vmatpush1.msra.mxu0 0.0
  %738 = vmatprep.mubr.f32.mxu0 0.0
  %739 = vmatmul.mubr.f32.gmra.mrb[0].mxu0 %v593
  %v740 = vpop.f32.mrb[0].mxu0
  %v741 = vadd.f32 0.0, %v740
  %v742 = vpop.f32.mrb[0].mxu0
  %v743 = vadd.f32 0.0, %v742
  %744 = vdwg.mxu0
  %v745 = vadd.f32 %v599, %v670
  %v746 = vadd.f32 %v600, %v672
  %v747 = vadd.f32 %v601, %v741
  %v748 = vadd.f32 %v602, %v743
  %v749 = vmul.f32 %v745, 0.5
  %v750 = vtanh.pop %v749
  %v751 = vmul.f32 %v750, 0.5
  %v752 = vadd.f32 %v751, 0.5
  %v753 = vmul.f32 %v746, 0.5
  %v754 = vtanh.pop %v753
  %v755 = vmul.f32 %v754, 0.5
  %v756 = vadd.f32 %v755, 0.5
  %v757 = vtanh.pop %v747
  %v758 = vmul.f32 %v748, 0.5
  %v759 = vtanh.pop %v758
  %v760 = vmul.f32 %v759, 0.5
  %v761 = vadd.f32 %v760, 0.5
  %v762 = vmul.f32 %v756, %v591
  %v763 = vmul.f32 %v752, %v757
  %v764 = vadd.f32 %v762, %v763
  %v765 = vtanh.pop %v764
  %v766 = vmul.f32 %v761, %v765
  %s767 = scalar_lea.vmem %s2, 16
  %768 = vst [vmem:[%s767] sm:$0xff] %v766
  %s769 = scalar_lea.vmem %s3, 16
  %770 = vst [vmem:[%s769] sm:$0xff] %v764
  %s771 = scalar_lea.vmem %s0, 96
  %v772 = vld [vmem:[%s771] sm:$0xff]
  %v773 = vld [vmem:[%s771 + $0x8] sm:$0xff]
  %v774 = vld [vmem:[%s771 + $0x10] sm:$0xff]
  %v775 = vld [vmem:[%s771 + $0x18] sm:$0xff]
  %776 = vmatprep.subr.mxu0 %v190
  %777 = vmatpush1.msra.mxu0 %v189
  %778 = vmatprep.subr.mxu0 %v194
  %779 = vmatpush1.msra.mxu0 %v193
  %780 = vmatprep.subr.mxu0 %v198
  %781 = vmatpush1.msra.mxu0 %v197
  %782 = vmatprep.subr.mxu0 %v202
  %783 = vmatpush1.msra.mxu0 %v201
  %784 = vmatprep.subr.mxu0 %v206
  %785 = vmatpush1.msra.mxu0 %v205
  %786 = vmatprep.subr.mxu0 %v210
  %787 = vmatpush1.msra.mxu0 %v209
  %788 = vmatprep.subr.mxu0 %v214
  %789 = vmatpush1.msra.mxu0 %v213
  %790 = vmatprep.subr.mxu0 %v218
  %791 = vmatpush1.msra.mxu0 %v217
  %792 = vmatprep.subr.mxu0 %v222
  %793 = vmatpush1.msra.mxu0 %v221
  %794 = vmatprep.subr.mxu0 %v226
  %795 = vmatpush1.msra.mxu0 %v225
  %796 = vmatprep.subr.mxu0 %v230
  %797 = vmatpush1.msra.mxu0 %v229
  %798 = vmatprep.subr.mxu0 %v234
  %799 = vmatpush1.msra.mxu0 %v233
  %800 = vmatprep.subr.mxu0 %v238
  %801 = vmatpush1.msra.mxu0 %v237
  %802 = vmatprep.subr.mxu0 %v242
  %803 = vmatpush1.msra.mxu0 %v241
  %804 = vmatprep.subr.mxu0 %v246
  %805 = vmatpush1.msra.mxu0 %v245
  %806 = vmatprep.subr.mxu0 %v250
  %807 = vmatpush1.msra.mxu0 %v249
  %808 = vmatprep.subr.mxu0 0.0
  %809 = vmatpush1.msra.mxu0 0.0
  %810 = vmatprep.subr.mxu0 0.0
  %811 = vmatpush1.msra.mxu0 0.0
  %812 = vmatprep.subr.mxu0 0.0
  %813 = vmatpush1.msra.mxu0 0.0
  %814 = vmatprep.subr.mxu0 0.0
  %815 = vmatpush1.msra.mxu0 0.0
  %816 = vmatprep.subr.mxu0 0.0
  %817 = vmatpush1.msra.mxu0 0.0
  %818 = vmatprep.subr.mxu0 0.0
  %819 = vmatpush1.msra.mxu0 0.0
  %820 = vmatprep.subr.mxu0 0.0
  %821 = vmatpush1.msra.mxu0 0.0
  %822 = vmatprep.subr.mxu0 0.0
  %823 = vmatpush1.msra.mxu0 0.0
  %824 = vmatprep.subr.mxu0 0.0
  %825 = vmatpush1.msra.mxu0 0.0
  %826 = vmatprep.subr.mxu0 0.0
  %827 = vmatpush1.msra.mxu0 0.0
  %828 = vmatprep.subr.mxu0 0.0
  %829 = vmatpush1.msra.mxu0 0.0
  %830 = vmatprep.subr.mxu0 0.0
  %831 = vmatpush1.msra.mxu0 0.0
  %832 = vmatprep.subr.mxu0 0.0
  %833 = vmatpush1.msra.mxu0 0.0
  %834 = vmatprep.subr.mxu0 0.0
  %835 = vmatpush1.msra.mxu0 0.0
  %836 = vmatprep.subr.mxu0 0.0
  %837 = vmatpush1.msra.mxu0 0.0
  %838 = vmatprep.subr.mxu0 0.0
  %839 = vmatpush1.msra.mxu0 0.0
  %840 = vmatprep.mubr.f32.mxu0 0.0
  %841 = vmatmul.mubr.f32.gmra.mrb[0].mxu0 %v766
  %v842 = vpop.f32.mrb[0].mxu0
  %v843 = vadd.f32 0.0, %v842
  %v844 = vpop.f32.mrb[0].mxu0
  %v845 = vadd.f32 0.0, %v844
  %846 = vdwg.mxu0
  %847 = vmatprep.subr.mxu0 %v192
  %848 = vmatpush1.msra.mxu0 %v191
  %849 = vmatprep.subr.mxu0 %v196
  %850 = vmatpush1.msra.mxu0 %v195
  %851 = vmatprep.subr.mxu0 %v200
  %852 = vmatpush1.msra.mxu0 %v199
  %853 = vmatprep.subr.mxu0 %v204
  %854 = vmatpush1.msra.mxu0 %v203
  %855 = vmatprep.subr.mxu0 %v208
  %856 = vmatpush1.msra.mxu0 %v207
  %857 = vmatprep.subr.mxu0 %v212
  %858 = vmatpush1.msra.mxu0 %v211
  %859 = vmatprep.subr.mxu0 %v216
  %860 = vmatpush1.msra.mxu0 %v215
  %861 = vmatprep.subr.mxu0 %v220
  %862 = vmatpush1.msra.mxu0 %v219
  %863 = vmatprep.subr.mxu0 %v224
  %864 = vmatpush1.msra.mxu0 %v223
  %865 = vmatprep.subr.mxu0 %v228
  %866 = vmatpush1.msra.mxu0 %v227
  %867 = vmatprep.subr.mxu0 %v232
  %868 = vmatpush1.msra.mxu0 %v231
  %869 = vmatprep.subr.mxu0 %v236
  %870 = vmatpush1.msra.mxu0 %v235
  %871 = vmatprep.subr.mxu0 %v240
  %872 = vmatpush1.msra.mxu0 %v239
  %873 = vmatprep.subr.mxu0 %v244
  %874 = vmatpush1.msra.mxu0 %v243
  %875 = vmatprep.subr.mxu0 %v248
  %876 = vmatpush1.msra.mxu0 %v247
  %877 = vmatprep.subr.mxu0 %v252
  %878 = vmatpush1.msra.mxu0 %v251
  %879 = vmatprep.subr.mxu0 0.0
  %880 = vmatpush1.msra.mxu0 0.0
  %881 = vmatprep.subr.mxu0 0.0
  %882 = vmatpush1.msra.mxu0 0.0
  %883 = vmatprep.subr.mxu0 0.0
  %884 = vmatpush1.msra.mxu0 0.0
  %885 = vmatprep.subr.mxu0 0.0
  %886 = vmatpush1.msra.mxu0 0.0
  %887 = vmatprep.subr.mxu0 0.0
  %888 = vmatpush1.msra.mxu0 0.0
  %889 = vmatprep.subr.mxu0 0.0
  %890 = vmatpush1.msra.mxu0 0.0
  %891 = vmatprep.subr.mxu0 0.0
  %892 = vmatpush1.msra.mxu0 0.0
  %893 = vmatprep.subr.mxu0 0.0
  %894 = vmatpush1.msra.mxu0 0.0
  %895 = vmatprep.subr.mxu0 0.0
  %896 = vmatpush1.msra.mxu0 0.0
  %897 = vmatprep.subr.mxu0 0.0
  %898 = vmatpush1.msra.mxu0 0.0
  %899 = vmatprep.subr.mxu0 0.0
  %900 = vmatpush1.msra.mxu0 0.0
  %901 = vmatprep.subr.mxu0 0.0
  %902 = vmatpush1.msra.mxu0 0.0
  %903 = vmatprep.subr.mxu0 0.0
  %904 = vmatpush1.msra.mxu0 0.0
  %905 = vmatprep.subr.mxu0 0.0
  %906 = vmatpush1.msra.mxu0 0.0
  %907 = vmatprep.subr.mxu0 0.0
  %908 = vmatpush1.msra.mxu0 0.0
  %909 = vmatprep.subr.mxu0 0.0
  %910 = vmatpush1.msra.mxu0 0.0
  %911 = vmatprep.mubr.f32.mxu0 0.0
  %912 = vmatmul.mubr.f32.gmra.mrb[0].mxu0 %v766
  %v913 = vpop.f32.mrb[0].mxu0
  %v914 = vadd.f32 0.0, %v913
  %v915 = vpop.f32.mrb[0].mxu0
  %v916 = vadd.f32 0.0, %v915
  %917 = vdwg.mxu0
  %v918 = vadd.f32 %v772, %v843
  %v919 = vadd.f32 %v773, %v845
  %v920 = vadd.f32 %v774, %v914
  %v921 = vadd.f32 %v775, %v916
  %v922 = vmul.f32 %v918, 0.5
  %v923 = vtanh.pop %v922
  %v924 = vmul.f32 %v923, 0.5
  %v925 = vadd.f32 %v924, 0.5
  %v926 = vmul.f32 %v919, 0.5
  %v927 = vtanh.pop %v926
  %v928 = vmul.f32 %v927, 0.5
  %v929 = vadd.f32 %v928, 0.5
  %v930 = vtanh.pop %v920
  %v931 = vmul.f32 %v921, 0.5
  %v932 = vtanh.pop %v931
  %v933 = vmul.f32 %v932, 0.5
  %v934 = vadd.f32 %v933, 0.5
  %v935 = vmul.f32 %v929, %v764
  %v936 = vmul.f32 %v925, %v930
  %v937 = vadd.f32 %v935, %v936
  %v938 = vtanh.pop %v937
  %v939 = vmul.f32 %v934, %v938
  %s940 = scalar_lea.vmem %s2, 24
  %941 = vst [vmem:[%s940] sm:$0xff] %v939
  %s942 = scalar_lea.vmem %s3, 24
  %943 = vst [vmem:[%s942] sm:$0xff] %v937
  %s944 = scalar_lea.vmem %s0, 128
  %v945 = vld [vmem:[%s944] sm:$0xff]
  %v946 = vld [vmem:[%s944 + $0x8] sm:$0xff]
  %v947 = vld [vmem:[%s944 + $0x10] sm:$0xff]
  %v948 = vld [vmem:[%s944 + $0x18] sm:$0xff]
  %949 = vmatprep.subr.mxu0 %v190
  %950 = vmatpush1.msra.mxu0 %v189
  %951 = vmatprep.subr.mxu0 %v194
  %952 = vmatpush1.msra.mxu0 %v193
  %953 = vmatprep.subr.mxu0 %v198
  %954 = vmatpush1.msra.mxu0 %v197
  %955 = vmatprep.subr.mxu0 %v202
  %956 = vmatpush1.msra.mxu0 %v201
  %957 = vmatprep.subr.mxu0 %v206
  %958 = vmatpush1.msra.mxu0 %v205
  %959 = vmatprep.subr.mxu0 %v210
  %960 = vmatpush1.msra.mxu0 %v209
  %961 = vmatprep.subr.mxu0 %v214
  %962 = vmatpush1.msra.mxu0 %v213
  %963 = vmatprep.subr.mxu0 %v218
  %964 = vmatpush1.msra.mxu0 %v217
  %965 = vmatprep.subr.mxu0 %v222
  %966 = vmatpush1.msra.mxu0 %v221
  %967 = vmatprep.subr.mxu0 %v226
  %968 = vmatpush1.msra.mxu0 %v225
  %969 = vmatprep.subr.mxu0 %v230
  %970 = vmatpush1.msra.mxu0 %v229
  %971 = vmatprep.subr.mxu0 %v234
  %972 = vmatpush1.msra.mxu0 %v233
  %973 = vmatprep.subr.mxu0 %v238
  %974 = vmatpush1.msra.mxu0 %v237
  %975 = vmatprep.subr.mxu0 %v242
  %976 = vmatpush1.msra.mxu0 %v241
  %977 = vmatprep.subr.mxu0 %v246
  %978 = vmatpush1.msra.mxu0 %v245
  %979 = vmatprep.subr.mxu0 %v250
  %980 = vmatpush1.msra.mxu0 %v249
  %981 = vmatprep.subr.mxu0 0.0
  %982 = vmatpush1.msra.mxu0 0.0
  %983 = vmatprep.subr.mxu0 0.0
  %984 = vmatpush1.msra.mxu0 0.0
  %985 = vmatprep.subr.mxu0 0.0
  %986 = vmatpush1.msra.mxu0 0.0
  %987 = vmatprep.subr.mxu0 0.0
  %988 = vmatpush1.msra.mxu0 0.0
  %989 = vmatprep.subr.mxu0 0.0
  %990 = vmatpush1.msra.mxu0 0.0
  %991 = vmatprep.subr.mxu0 0.0
  %992 = vmatpush1.msra.mxu0 0.0
  %993 = vmatprep.subr.mxu0 0.0
  %994 = vmatpush1.msra.mxu0 0.0
  %995 = vmatprep.subr.mxu0 0.0
  %996 = vmatpush1.msra.mxu0 0.0
  %997 = vmatprep.subr.mxu0 0.0
  %998 = vmatpush1.msra.mxu0 0.0
  %999 = vmatprep.subr.mxu0 0.0
  %1000 = vmatpush1.msra.mxu0 0.0
  %1001 = vmatprep.subr.mxu0 0.0
  %1002 = vmatpush1.msra.mxu0 0.0
  %1003 = vmatprep.subr.mxu0 0.0
  %1004 = vmatpush1.msra.mxu0 0.0
  %1005 = vmatprep.subr.mxu0 0.0
  %1006 = vmatpush1.msra.mxu0 0.0
  %1007 = vmatprep.subr.mxu0 0.0
  %1008 = vmatpush1.msra.mxu0 0.0
  %1009 = vmatprep.subr.mxu0 0.0
  %1010 = vmatpush1.msra.mxu0 0.0
  %1011 = vmatprep.subr.mxu0 0.0
  %1012 = vmatpush1.msra.mxu0 0.0
  %1013 = vmatprep.mubr.f32.mxu0 0.0
  %1014 = vmatmul.mubr.f32.gmra.mrb[0].mxu0 %v939
  %v1015 = vpop.f32.mrb[0].mxu0
  %v1016 = vadd.f32 0.0, %v1015
  %v1017 = vpop.f32.mrb[0].mxu0
  %v1018 = vadd.f32 0.0, %v1017
  %1019 = vdwg.mxu0
  %1020 = vmatprep.subr.mxu0 %v192
  %1021 = vmatpush1.msra.mxu0 %v191
  %1022 = vmatprep.subr.mxu0 %v196
  %1023 = vmatpush1.msra.mxu0 %v195
  %1024 = vmatprep.subr.mxu0 %v200
  %1025 = vmatpush1.msra.mxu0 %v199
  %1026 = vmatprep.subr.mxu0 %v204
  %1027 = vmatpush1.msra.mxu0 %v203
  %1028 = vmatprep.subr.mxu0 %v208
  %1029 = vmatpush1.msra.mxu0 %v207
  %1030 = vmatprep.subr.mxu0 %v212
  %1031 = vmatpush1.msra.mxu0 %v211
  %1032 = vmatprep.subr.mxu0 %v216
  %1033 = vmatpush1.msra.mxu0 %v215
  %1034 = vmatprep.subr.mxu0 %v220
  %1035 = vmatpush1.msra.mxu0 %v219
  %1036 = vmatprep.subr.mxu0 %v224
  %1037 = vmatpush1.msra.mxu0 %v223
  %1038 = vmatprep.subr.mxu0 %v228
  %1039 = vmatpush1.msra.mxu0 %v227
  %1040 = vmatprep.subr.mxu0 %v232
  %1041 = vmatpush1.msra.mxu0 %v231
  %1042 = vmatprep.subr.mxu0 %v236
  %1043 = vmatpush1.msra.mxu0 %v235
  %1044 = vmatprep.subr.mxu0 %v240
  %1045 = vmatpush1.msra.mxu0 %v239
  %1046 = vmatprep.subr.mxu0 %v244
  %1047 = vmatpush1.msra.mxu0 %v243
  %1048 = vmatprep.subr.mxu0 %v248
  %1049 = vmatpush1.msra.mxu0 %v247
  %1050 = vmatprep.subr.mxu0 %v252
  %1051 = vmatpush1.msra.mxu0 %v251
  %1052 = vmatprep.subr.mxu0 0.0
  %1053 = vmatpush1.msra.mxu0 0.0
  %1054 = vmatprep.subr.mxu0 0.0
  %1055 = vmatpush1.msra.mxu0 0.0
  %1056 = vmatprep.subr.mxu0 0.0
  %1057 = vmatpush1.msra.mxu0 0.0
  %1058 = vmatprep.subr.mxu0 0.0
  %1059 = vmatpush1.msra.mxu0 0.0
  %1060 = vmatprep.subr.mxu0 0.0
  %1061 = vmatpush1.msra.mxu0 0.0
  %1062 = vmatprep.subr.mxu0 0.0
  %1063 = vmatpush1.msra.mxu0 0.0
  %1064 = vmatprep.subr.mxu0 0.0
  %1065 = vmatpush1.msra.mxu0 0.0
  %1066 = vmatprep.subr.mxu0 0.0
  %1067 = vmatpush1.msra.mxu0 0.0
  %1068 = vmatprep.subr.mxu0 0.0
  %1069 = vmatpush1.msra.mxu0 0.0
  %1070 = vmatprep.subr.mxu0 0.0
  %1071 = vmatpush1.msra.mxu0 0.0
  %1072 = vmatprep.subr.mxu0 0.0
  %1073 = vmatpush1.msra.mxu0 0.0
  %1074 = vmatprep.subr.mxu0 0.0
  %1075 = vmatpush1.msra.mxu0 0.0
  %1076 = vmatprep.subr.mxu0 0.0
  %1077 = vmatpush1.msra.mxu0 0.0
  %1078 = vmatprep.subr.mxu0 0.0
  %1079 = vmatpush1.msra.mxu0 0.0
  %1080 = vmatprep.subr.mxu0 0.0
  %1081 = vmatpush1.msra.mxu0 0.0
  %1082 = vmatprep.subr.mxu0 0.0
  %1083 = vmatpush1.msra.mxu0 0.0
  %1084 = vmatprep.mubr.f32.mxu0 0.0
  %1085 = vmatmul.mubr.f32.gmra.mrb[0].mxu0 %v939
  %v1086 = vpop.f32.mrb[0].mxu0
  %v1087 = vadd.f32 0.0, %v1086
  %v1088 = vpop.f32.mrb[0].mxu0
  %v1089 = vadd.f32 0.0, %v1088
  %1090 = vdwg.mxu0
  %v1091 = vadd.f32 %v945, %v1016
  %v1092 = vadd.f32 %v946, %v1018
  %v1093 = vadd.f32 %v947, %v1087
  %v1094 = vadd.f32 %v948, %v1089
  %v1095 = vmul.f32 %v1091, 0.5
  %v1096 = vtanh.pop %v1095
  %v1097 = vmul.f32 %v1096, 0.5
  %v1098 = vadd.f32 %v1097, 0.5
  %v1099 = vmul.f32 %v1092, 0.5
  %v1100 = vtanh.pop %v1099
  %v1101 = vmul.f32 %v1100, 0.5
  %v1102 = vadd.f32 %v1101, 0.5
  %v1103 = vtanh.pop %v1093
  %v1104 = vmul.f32 %v1094, 0.5
  %v1105 = vtanh.pop %v1104
  %v1106 = vmul.f32 %v1105, 0.5
  %v1107 = vadd.f32 %v1106, 0.5
  %v1108 = vmul.f32 %v1102, %v937
  %v1109 = vmul.f32 %v1098, %v1103
  %v1110 = vadd.f32 %v1108, %v1109
  %v1111 = vtanh.pop %v1110
  %v1112 = vmul.f32 %v1107, %v1111
  %s1113 = scalar_lea.vmem %s2, 32
  %1114 = vst [vmem:[%s1113] sm:$0xff] %v1112
  %s1115 = scalar_lea.vmem %s3, 32
  %1116 = vst [vmem:[%s1115] sm:$0xff] %v1110
  %s1117 = scalar_lea.vmem %s0, 160
  %v1118 = vld [vmem:[%s1117] sm:$0xff]
  %v1119 = vld [vmem:[%s1117 + $0x8] sm:$0xff]
  %v1120 = vld [vmem:[%s1117 + $0x10] sm:$0xff]
  %v1121 = vld [vmem:[%s1117 + $0x18] sm:$0xff]
  %1122 = vmatprep.subr.mxu0 %v190
  %1123 = vmatpush1.msra.mxu0 %v189
  %1124 = vmatprep.subr.mxu0 %v194
  %1125 = vmatpush1.msra.mxu0 %v193
  %1126 = vmatprep.subr.mxu0 %v198
  %1127 = vmatpush1.msra.mxu0 %v197
  %1128 = vmatprep.subr.mxu0 %v202
  %1129 = vmatpush1.msra.mxu0 %v201
  %1130 = vmatprep.subr.mxu0 %v206
  %1131 = vmatpush1.msra.mxu0 %v205
  %1132 = vmatprep.subr.mxu0 %v210
  %1133 = vmatpush1.msra.mxu0 %v209
  %1134 = vmatprep.subr.mxu0 %v214
  %1135 = vmatpush1.msra.mxu0 %v213
  %1136 = vmatprep.subr.mxu0 %v218
  %1137 = vmatpush1.msra.mxu0 %v217
  %1138 = vmatprep.subr.mxu0 %v222
  %1139 = vmatpush1.msra.mxu0 %v221
  %1140 = vmatprep.subr.mxu0 %v226
  %1141 = vmatpush1.msra.mxu0 %v225
  %1142 = vmatprep.subr.mxu0 %v230
  %1143 = vmatpush1.msra.mxu0 %v229
  %1144 = vmatprep.subr.mxu0 %v234
  %1145 = vmatpush1.msra.mxu0 %v233
  %1146 = vmatprep.subr.mxu0 %v238
  %1147 = vmatpush1.msra.mxu0 %v237
  %1148 = vmatprep.subr.mxu0 %v242
  %1149 = vmatpush1.msra.mxu0 %v241
  %1150 = vmatprep.subr.mxu0 %v246
  %1151 = vmatpush1.msra.mxu0 %v245
  %1152 = vmatprep.subr.mxu0 %v250
  %1153 = vmatpush1.msra.mxu0 %v249
  %1154 = vmatprep.subr.mxu0 0.0
  %1155 = vmatpush1.msra.mxu0 0.0
  %1156 = vmatprep.subr.mxu0 0.0
  %1157 = vmatpush1.msra.mxu0 0.0
  %1158 = vmatprep.subr.mxu0 0.0
  %1159 = vmatpush1.msra.mxu0 0.0
  %1160 = vmatprep.subr.mxu0 0.0
  %1161 = vmatpush1.msra.mxu0 0.0
  %1162 = vmatprep.subr.mxu0 0.0
  %1163 = vmatpush1.msra.mxu0 0.0
  %1164 = vmatprep.subr.mxu0 0.0
  %1165 = vmatpush1.msra.mxu0 0.0
  %1166 = vmatprep.subr.mxu0 0.0
  %1167 = vmatpush1.msra.mxu0 0.0
  %1168 = vmatprep.subr.mxu0 0.0
  %1169 = vmatpush1.msra.mxu0 0.0
  %1170 = vmatprep.subr.mxu0 0.0
  %1171 = vmatpush1.msra.mxu0 0.0
  %1172 = vmatprep.subr.mxu0 0.0
  %1173 = vmatpush1.msra.mxu0 0.0
  %1174 = vmatprep.subr.mxu0 0.0
  %1175 = vmatpush1.msra.mxu0 0.0
  %1176 = vmatprep.subr.mxu0 0.0
  %1177 = vmatpush1.msra.mxu0 0.0
  %1178 = vmatprep.subr.mxu0 0.0
  %1179 = vmatpush1.msra.mxu0 0.0
  %1180 = vmatprep.subr.mxu0 0.0
  %1181 = vmatpush1.msra.mxu0 0.0
  %1182 = vmatprep.subr.mxu0 0.0
  %1183 = vmatpush1.msra.mxu0 0.0
  %1184 = vmatprep.subr.mxu0 0.0
  %1185 = vmatpush1.msra.mxu0 0.0
  %1186 = vmatprep.mubr.f32.mxu0 0.0
  %1187 = vmatmul.mubr.f32.gmra.mrb[0].mxu0 %v1112
  %v1188 = vpop.f32.mrb[0].mxu0
  %v1189 = vadd.f32 0.0, %v1188
  %v1190 = vpop.f32.mrb[0].mxu0
  %v1191 = vadd.f32 0.0, %v1190
  %1192 = vdwg.mxu0
  %1193 = vmatprep.subr.mxu0 %v192
  %1194 = vmatpush1.msra.mxu0 %v191
  %1195 = vmatprep.subr.mxu0 %v196
  %1196 = vmatpush1.msra.mxu0 %v195
  %1197 = vmatprep.subr.mxu0 %v200
  %1198 = vmatpush1.msra.mxu0 %v199
  %1199 = vmatprep.subr.mxu0 %v204
  %1200 = vmatpush1.msra.mxu0 %v203
  %1201 = vmatprep.subr.mxu0 %v208
  %1202 = vmatpush1.msra.mxu0 %v207
  %1203 = vmatprep.subr.mxu0 %v212
  %1204 = vmatpush1.msra.mxu0 %v211
  %1205 = vmatprep.subr.mxu0 %v216
  %1206 = vmatpush1.msra.mxu0 %v215
  %1207 = vmatprep.subr.mxu0 %v220
  %1208 = vmatpush1.msra.mxu0 %v219
  %1209 = vmatprep.subr.mxu0 %v224
  %1210 = vmatpush1.msra.mxu0 %v223
  %1211 = vmatprep.subr.mxu0 %v228
  %1212 = vmatpush1.msra.mxu0 %v227
  %1213 = vmatprep.subr.mxu0 %v232
  %1214 = vmatpush1.msra.mxu0 %v231
  %1215 = vmatprep.subr.mxu0 %v236
  %1216 = vmatpush1.msra.mxu0 %v235
  %1217 = vmatprep.subr.mxu0 %v240
  %1218 = vmatpush1.msra.mxu0 %v239
  %1219 = vmatprep.subr.mxu0 %v244
  %1220 = vmatpush1.msra.mxu0 %v243
  %1221 = vmatprep.subr.mxu0 %v248
  %1222 = vmatpush1.msra.mxu0 %v247
  %1223 = vmatprep.subr.mxu0 %v252
  %1224 = vmatpush1.msra.mxu0 %v251
  %1225 = vmatprep.subr.mxu0 0.0
  %1226 = vmatpush1.msra.mxu0 0.0
  %1227 = vmatprep.subr.mxu0 0.0
  %1228 = vmatpush1.msra.mxu0 0.0
  %1229 = vmatprep.subr.mxu0 0.0
  %1230 = vmatpush1.msra.mxu0 0.0
  %1231 = vmatprep.subr.mxu0 0.0
  %1232 = vmatpush1.msra.mxu0 0.0
  %1233 = vmatprep.subr.mxu0 0.0
  %1234 = vmatpush1.msra.mxu0 0.0
  %1235 = vmatprep.subr.mxu0 0.0
  %1236 = vmatpush1.msra.mxu0 0.0
  %1237 = vmatprep.subr.mxu0 0.0
  %1238 = vmatpush1.msra.mxu0 0.0
  %1239 = vmatprep.subr.mxu0 0.0
  %1240 = vmatpush1.msra.mxu0 0.0
  %1241 = vmatprep.subr.mxu0 0.0
  %1242 = vmatpush1.msra.mxu0 0.0
  %1243 = vmatprep.subr.mxu0 0.0
  %1244 = vmatpush1.msra.mxu0 0.0
  %1245 = vmatprep.subr.mxu0 0.0
  %1246 = vmatpush1.msra.mxu0 0.0
  %1247 = vmatprep.subr.mxu0 0.0
  %1248 = vmatpush1.msra.mxu0 0.0
  %1249 = vmatprep.subr.mxu0 0.0
  %1250 = vmatpush1.msra.mxu0 0.0
  %1251 = vmatprep.subr.mxu0 0.0
  %1252 = vmatpush1.msra.mxu0 0.0
  %1253 = vmatprep.subr.mxu0 0.0
  %1254 = vmatpush1.msra.mxu0 0.0
  %1255 = vmatprep.subr.mxu0 0.0
  %1256 = vmatpush1.msra.mxu0 0.0
  %1257 = vmatprep.mubr.f32.mxu0 0.0
  %1258 = vmatmul.mubr.f32.gmra.mrb[0].mxu0 %v1112
  %v1259 = vpop.f32.mrb[0].mxu0
  %v1260 = vadd.f32 0.0, %v1259
  %v1261 = vpop.f32.mrb[0].mxu0
  %v1262 = vadd.f32 0.0, %v1261
  %1263 = vdwg.mxu0
  %v1264 = vadd.f32 %v1118, %v1189
  %v1265 = vadd.f32 %v1119, %v1191
  %v1266 = vadd.f32 %v1120, %v1260
  %v1267 = vadd.f32 %v1121, %v1262
  %v1268 = vmul.f32 %v1264, 0.5
  %v1269 = vtanh.pop %v1268
  %v1270 = vmul.f32 %v1269, 0.5
  %v1271 = vadd.f32 %v1270, 0.5
  %v1272 = vmul.f32 %v1265, 0.5
  %v1273 = vtanh.pop %v1272
  %v1274 = vmul.f32 %v1273, 0.5
  %v1275 = vadd.f32 %v1274, 0.5
  %v1276 = vtanh.pop %v1266
  %v1277 = vmul.f32 %v1267, 0.5
  %v1278 = vtanh.pop %v1277
  %v1279 = vmul.f32 %v1278, 0.5
  %v1280 = vadd.f32 %v1279, 0.5
  %v1281 = vmul.f32 %v1275, %v1110
  %v1282 = vmul.f32 %v1271, %v1276
  %v1283 = vadd.f32 %v1281, %v1282
  %v1284 = vtanh.pop %v1283
  %v1285 = vmul.f32 %v1280, %v1284
  %s1286 = scalar_lea.vmem %s2, 40
  %1287 = vst [vmem:[%s1286] sm:$0xff] %v1285
  %s1288 = scalar_lea.vmem %s3, 40
  %1289 = vst [vmem:[%s1288] sm:$0xff] %v1283
  %s1290 = scalar_lea.vmem %s0, 192
  %v1291 = vld [vmem:[%s1290] sm:$0xff]
  %v1292 = vld [vmem:[%s1290 + $0x8] sm:$0xff]
  %v1293 = vld [vmem:[%s1290 + $0x10] sm:$0xff]
  %v1294 = vld [vmem:[%s1290 + $0x18] sm:$0xff]
  %1295 = vmatprep.subr.mxu0 %v190
  %1296 = vmatpush1.msra.mxu0 %v189
  %1297 = vmatprep.subr.mxu0 %v194
  %1298 = vmatpush1.msra.mxu0 %v193
  %1299 = vmatprep.subr.mxu0 %v198
  %1300 = vmatpush1.msra.mxu0 %v197
  %1301 = vmatprep.subr.mxu0 %v202
  %1302 = vmatpush1.msra.mxu0 %v201
  %1303 = vmatprep.subr.mxu0 %v206
  %1304 = vmatpush1.msra.mxu0 %v205
  %1305 = vmatprep.subr.mxu0 %v210
  %1306 = vmatpush1.msra.mxu0 %v209
  %1307 = vmatprep.subr.mxu0 %v214
  %1308 = vmatpush1.msra.mxu0 %v213
  %1309 = vmatprep.subr.mxu0 %v218
  %1310 = vmatpush1.msra.mxu0 %v217
  %1311 = vmatprep.subr.mxu0 %v222
  %1312 = vmatpush1.msra.mxu0 %v221
  %1313 = vmatprep.subr.mxu0 %v226
  %1314 = vmatpush1.msra.mxu0 %v225
  %1315 = vmatprep.subr.mxu0 %v230
  %1316 = vmatpush1.msra.mxu0 %v229
  %1317 = vmatprep.subr.mxu0 %v234
  %1318 = vmatpush1.msra.mxu0 %v233
  %1319 = vmatprep.subr.mxu0 %v238
  %1320 = vmatpush1.msra.mxu0 %v237
  %1321 = vmatprep.subr.mxu0 %v242
  %1322 = vmatpush1.msra.mxu0 %v241
  %1323 = vmatprep.subr.mxu0 %v246
  %1324 = vmatpush1.msra.mxu0 %v245
  %1325 = vmatprep.subr.mxu0 %v250
  %1326 = vmatpush1.msra.mxu0 %v249
  %1327 = vmatprep.subr.mxu0 0.0
  %1328 = vmatpush1.msra.mxu0 0.0
  %1329 = vmatprep.subr.mxu0 0.0
  %1330 = vmatpush1.msra.mxu0 0.0
  %1331 = vmatprep.subr.mxu0 0.0
  %1332 = vmatpush1.msra.mxu0 0.0
  %1333 = vmatprep.subr.mxu0 0.0
  %1334 = vmatpush1.msra.mxu0 0.0
  %1335 = vmatprep.subr.mxu0 0.0
  %1336 = vmatpush1.msra.mxu0 0.0
  %1337 = vmatprep.subr.mxu0 0.0
  %1338 = vmatpush1.msra.mxu0 0.0
  %1339 = vmatprep.subr.mxu0 0.0
  %1340 = vmatpush1.msra.mxu0 0.0
  %1341 = vmatprep.subr.mxu0 0.0
  %1342 = vmatpush1.msra.mxu0 0.0
  %1343 = vmatprep.subr.mxu0 0.0
  %1344 = vmatpush1.msra.mxu0 0.0
  %1345 = vmatprep.subr.mxu0 0.0
  %1346 = vmatpush1.msra.mxu0 0.0
  %1347 = vmatprep.subr.mxu0 0.0
  %1348 = vmatpush1.msra.mxu0 0.0
  %1349 = vmatprep.subr.mxu0 0.0
  %1350 = vmatpush1.msra.mxu0 0.0
  %1351 = vmatprep.subr.mxu0 0.0
  %1352 = vmatpush1.msra.mxu0 0.0
  %1353 = vmatprep.subr.mxu0 0.0
  %1354 = vmatpush1.msra.mxu0 0.0
  %1355 = vmatprep.subr.mxu0 0.0
  %1356 = vmatpush1.msra.mxu0 0.0
  %1357 = vmatprep.subr.mxu0 0.0
  %1358 = vmatpush1.msra.mxu0 0.0
  %1359 = vmatprep.mubr.f32.mxu0 0.0
  %1360 = vmatmul.mubr.f32.gmra.mrb[0].mxu0 %v1285
  %v1361 = vpop.f32.mrb[0].mxu0
  %v1362 = vadd.f32 0.0, %v1361
  %v1363 = vpop.f32.mrb[0].mxu0
  %v1364 = vadd.f32 0.0, %v1363
  %1365 = vdwg.mxu0
  %1366 = vmatprep.subr.mxu0 %v192
  %1367 = vmatpush1.msra.mxu0 %v191
  %1368 = vmatprep.subr.mxu0 %v196
  %1369 = vmatpush1.msra.mxu0 %v195
  %1370 = vmatprep.subr.mxu0 %v200
  %1371 = vmatpush1.msra.mxu0 %v199
  %1372 = vmatprep.subr.mxu0 %v204
  %1373 = vmatpush1.msra.mxu0 %v203
  %1374 = vmatprep.subr.mxu0 %v208
  %1375 = vmatpush1.msra.mxu0 %v207
  %1376 = vmatprep.subr.mxu0 %v212
  %1377 = vmatpush1.msra.mxu0 %v211
  %1378 = vmatprep.subr.mxu0 %v216
  %1379 = vmatpush1.msra.mxu0 %v215
  %1380 = vmatprep.subr.mxu0 %v220
  %1381 = vmatpush1.msra.mxu0 %v219
  %1382 = vmatprep.subr.mxu0 %v224
  %1383 = vmatpush1.msra.mxu0 %v223
  %1384 = vmatprep.subr.mxu0 %v228
  %1385 = vmatpush1.msra.mxu0 %v227
  %1386 = vmatprep.subr.mxu0 %v232
  %1387 = vmatpush1.msra.mxu0 %v231
  %1388 = vmatprep.subr.mxu0 %v236
  %1389 = vmatpush1.msra.mxu0 %v235
  %1390 = vmatprep.subr.mxu0 %v240
  %1391 = vmatpush1.msra.mxu0 %v239
  %1392 = vmatprep.subr.mxu0 %v244
  %1393 = vmatpush1.msra.mxu0 %v243
  %1394 = vmatprep.subr.mxu0 %v248
  %1395 = vmatpush1.msra.mxu0 %v247
  %1396 = vmatprep.subr.mxu0 %v252
  %1397 = vmatpush1.msra.mxu0 %v251
  %1398 = vmatprep.subr.mxu0 0.0
  %1399 = vmatpush1.msra.mxu0 0.0
  %1400 = vmatprep.subr.mxu0 0.0
  %1401 = vmatpush1.msra.mxu0 0.0
  %1402 = vmatprep.subr.mxu0 0.0
  %1403 = vmatpush1.msra.mxu0 0.0
  %1404 = vmatprep.subr.mxu0 0.0
  %1405 = vmatpush1.msra.mxu0 0.0
  %1406 = vmatprep.subr.mxu0 0.0
  %1407 = vmatpush1.msra.mxu0 0.0
  %1408 = vmatprep.subr.mxu0 0.0
  %1409 = vmatpush1.msra.mxu0 0.0
  %1410 = vmatprep.subr.mxu0 0.0
  %1411 = vmatpush1.msra.mxu0 0.0
  %1412 = vmatprep.subr.mxu0 0.0
  %1413 = vmatpush1.msra.mxu0 0.0
  %1414 = vmatprep.subr.mxu0 0.0
  %1415 = vmatpush1.msra.mxu0 0.0
  %1416 = vmatprep.subr.mxu0 0.0
  %1417 = vmatpush1.msra.mxu0 0.0
  %1418 = vmatprep.subr.mxu0 0.0
  %1419 = vmatpush1.msra.mxu0 0.0
  %1420 = vmatprep.subr.mxu0 0.0
  %1421 = vmatpush1.msra.mxu0 0.0
  %1422 = vmatprep.subr.mxu0 0.0
  %1423 = vmatpush1.msra.mxu0 0.0
  %1424 = vmatprep.subr.mxu0 0.0
  %1425 = vmatpush1.msra.mxu0 0.0
  %1426 = vmatprep.subr.mxu0 0.0
  %1427 = vmatpush1.msra.mxu0 0.0
  %1428 = vmatprep.subr.mxu0 0.0
  %1429 = vmatpush1.msra.mxu0 0.0
  %1430 = vmatprep.mubr.f32.mxu0 0.0
  %1431 = vmatmul.mubr.f32.gmra.mrb[0].mxu0 %v1285
  %v1432 = vpop.f32.mrb[0].mxu0
  %v1433 = vadd.f32 0.0, %v1432
  %v1434 = vpop.f32.mrb[0].mxu0
  %v1435 = vadd.f32 0.0, %v1434
  %1436 = vdwg.mxu0
  %v1437 = vadd.f32 %v1291, %v1362
  %v1438 = vadd.f32 %v1292, %v1364
  %v1439 = vadd.f32 %v1293, %v1433
  %v1440 = vadd.f32 %v1294, %v1435
  %v1441 = vmul.f32 %v1437, 0.5
  %v1442 = vtanh.pop %v1441
  %v1443 = vmul.f32 %v1442, 0.5
  %v1444 = vadd.f32 %v1443, 0.5
  %v1445 = vmul.f32 %v1438, 0.5
  %v1446 = vtanh.pop %v1445
  %v1447 = vmul.f32 %v1446, 0.5
  %v1448 = vadd.f32 %v1447, 0.5
  %v1449 = vtanh.pop %v1439
  %v1450 = vmul.f32 %v1440, 0.5
  %v1451 = vtanh.pop %v1450
  %v1452 = vmul.f32 %v1451, 0.5
  %v1453 = vadd.f32 %v1452, 0.5
  %v1454 = vmul.f32 %v1448, %v1283
  %v1455 = vmul.f32 %v1444, %v1449
  %v1456 = vadd.f32 %v1454, %v1455
  %v1457 = vtanh.pop %v1456
  %v1458 = vmul.f32 %v1453, %v1457
  %s1459 = scalar_lea.vmem %s2, 48
  %1460 = vst [vmem:[%s1459] sm:$0xff] %v1458
  %s1461 = scalar_lea.vmem %s3, 48
  %1462 = vst [vmem:[%s1461] sm:$0xff] %v1456
  %s1463 = scalar_lea.vmem %s0, 224
  %v1464 = vld [vmem:[%s1463] sm:$0xff]
  %v1465 = vld [vmem:[%s1463 + $0x8] sm:$0xff]
  %v1466 = vld [vmem:[%s1463 + $0x10] sm:$0xff]
  %v1467 = vld [vmem:[%s1463 + $0x18] sm:$0xff]
  %1468 = vmatprep.subr.mxu0 %v190
  %1469 = vmatpush1.msra.mxu0 %v189
  %1470 = vmatprep.subr.mxu0 %v194
  %1471 = vmatpush1.msra.mxu0 %v193
  %1472 = vmatprep.subr.mxu0 %v198
  %1473 = vmatpush1.msra.mxu0 %v197
  %1474 = vmatprep.subr.mxu0 %v202
  %1475 = vmatpush1.msra.mxu0 %v201
  %1476 = vmatprep.subr.mxu0 %v206
  %1477 = vmatpush1.msra.mxu0 %v205
  %1478 = vmatprep.subr.mxu0 %v210
  %1479 = vmatpush1.msra.mxu0 %v209
  %1480 = vmatprep.subr.mxu0 %v214
  %1481 = vmatpush1.msra.mxu0 %v213
  %1482 = vmatprep.subr.mxu0 %v218
  %1483 = vmatpush1.msra.mxu0 %v217
  %1484 = vmatprep.subr.mxu0 %v222
  %1485 = vmatpush1.msra.mxu0 %v221
  %1486 = vmatprep.subr.mxu0 %v226
  %1487 = vmatpush1.msra.mxu0 %v225
  %1488 = vmatprep.subr.mxu0 %v230
  %1489 = vmatpush1.msra.mxu0 %v229
  %1490 = vmatprep.subr.mxu0 %v234
  %1491 = vmatpush1.msra.mxu0 %v233
  %1492 = vmatprep.subr.mxu0 %v238
  %1493 = vmatpush1.msra.mxu0 %v237
  %1494 = vmatprep.subr.mxu0 %v242
  %1495 = vmatpush1.msra.mxu0 %v241
  %1496 = vmatprep.subr.mxu0 %v246
  %1497 = vmatpush1.msra.mxu0 %v245
  %1498 = vmatprep.subr.mxu0 %v250
  %1499 = vmatpush1.msra.mxu0 %v249
  %1500 = vmatprep.subr.mxu0 0.0
  %1501 = vmatpush1.msra.mxu0 0.0
  %1502 = vmatprep.subr.mxu0 0.0
  %1503 = vmatpush1.msra.mxu0 0.0
  %1504 = vmatprep.subr.mxu0 0.0
  %1505 = vmatpush1.msra.mxu0 0.0
  %1506 = vmatprep.subr.mxu0 0.0
  %1507 = vmatpush1.msra.mxu0 0.0
  %1508 = vmatprep.subr.mxu0 0.0
  %1509 = vmatpush1.msra.mxu0 0.0
  %1510 = vmatprep.subr.mxu0 0.0
  %1511 = vmatpush1.msra.mxu0 0.0
  %1512 = vmatprep.subr.mxu0 0.0
  %1513 = vmatpush1.msra.mxu0 0.0
  %1514 = vmatprep.subr.mxu0 0.0
  %1515 = vmatpush1.msra.mxu0 0.0
  %1516 = vmatprep.subr.mxu0 0.0
  %1517 = vmatpush1.msra.mxu0 0.0
  %1518 = vmatprep.subr.mxu0 0.0
  %1519 = vmatpush1.msra.mxu0 0.0
  %1520 = vmatprep.subr.mxu0 0.0
  %1521 = vmatpush1.msra.mxu0 0.0
  %1522 = vmatprep.subr.mxu0 0.0
  %1523 = vmatpush1.msra.mxu0 0.0
  %1524 = vmatprep.subr.mxu0 0.0
  %1525 = vmatpush1.msra.mxu0 0.0
  %1526 = vmatprep.subr.mxu0 0.0
  %1527 = vmatpush1.msra.mxu0 0.0
  %1528 = vmatprep.subr.mxu0 0.0
  %1529 = vmatpush1.msra.mxu0 0.0
  %1530 = vmatprep.subr.mxu0 0.0
  %1531 = vmatpush1.msra.mxu0 0.0
  %1532 = vmatprep.mubr.f32.mxu0 0.0
  %1533 = vmatmul.mubr.f32.gmra.mrb[0].mxu0 %v1458
  %v1534 = vpop.f32.mrb[0].mxu0
  %v1535 = vadd.f32 0.0, %v1534
  %v1536 = vpop.f32.mrb[0].mxu0
  %v1537 = vadd.f32 0.0, %v1536
  %1538 = vdwg.mxu0
  %1539 = vmatprep.subr.mxu0 %v192
  %1540 = vmatpush1.msra.mxu0 %v191
  %1541 = vmatprep.subr.mxu0 %v196
  %1542 = vmatpush1.msra.mxu0 %v195
  %1543 = vmatprep.subr.mxu0 %v200
  %1544 = vmatpush1.msra.mxu0 %v199
  %1545 = vmatprep.subr.mxu0 %v204
  %1546 = vmatpush1.msra.mxu0 %v203
  %1547 = vmatprep.subr.mxu0 %v208
  %1548 = vmatpush1.msra.mxu0 %v207
  %1549 = vmatprep.subr.mxu0 %v212
  %1550 = vmatpush1.msra.mxu0 %v211
  %1551 = vmatprep.subr.mxu0 %v216
  %1552 = vmatpush1.msra.mxu0 %v215
  %1553 = vmatprep.subr.mxu0 %v220
  %1554 = vmatpush1.msra.mxu0 %v219
  %1555 = vmatprep.subr.mxu0 %v224
  %1556 = vmatpush1.msra.mxu0 %v223
  %1557 = vmatprep.subr.mxu0 %v228
  %1558 = vmatpush1.msra.mxu0 %v227
  %1559 = vmatprep.subr.mxu0 %v232
  %1560 = vmatpush1.msra.mxu0 %v231
  %1561 = vmatprep.subr.mxu0 %v236
  %1562 = vmatpush1.msra.mxu0 %v235
  %1563 = vmatprep.subr.mxu0 %v240
  %1564 = vmatpush1.msra.mxu0 %v239
  %1565 = vmatprep.subr.mxu0 %v244
  %1566 = vmatpush1.msra.mxu0 %v243
  %1567 = vmatprep.subr.mxu0 %v248
  %1568 = vmatpush1.msra.mxu0 %v247
  %1569 = vmatprep.subr.mxu0 %v252
  %1570 = vmatpush1.msra.mxu0 %v251
  %1571 = vmatprep.subr.mxu0 0.0
  %1572 = vmatpush1.msra.mxu0 0.0
  %1573 = vmatprep.subr.mxu0 0.0
  %1574 = vmatpush1.msra.mxu0 0.0
  %1575 = vmatprep.subr.mxu0 0.0
  %1576 = vmatpush1.msra.mxu0 0.0
  %1577 = vmatprep.subr.mxu0 0.0
  %1578 = vmatpush1.msra.mxu0 0.0
  %1579 = vmatprep.subr.mxu0 0.0
  %1580 = vmatpush1.msra.mxu0 0.0
  %1581 = vmatprep.subr.mxu0 0.0
  %1582 = vmatpush1.msra.mxu0 0.0
  %1583 = vmatprep.subr.mxu0 0.0
  %1584 = vmatpush1.msra.mxu0 0.0
  %1585 = vmatprep.subr.mxu0 0.0
  %1586 = vmatpush1.msra.mxu0 0.0
  %1587 = vmatprep.subr.mxu0 0.0
  %1588 = vmatpush1.msra.mxu0 0.0
  %1589 = vmatprep.subr.mxu0 0.0
  %1590 = vmatpush1.msra.mxu0 0.0
  %1591 = vmatprep.subr.mxu0 0.0
  %1592 = vmatpush1.msra.mxu0 0.0
  %1593 = vmatprep.subr.mxu0 0.0
  %1594 = vmatpush1.msra.mxu0 0.0
  %1595 = vmatprep.subr.mxu0 0.0
  %1596 = vmatpush1.msra.mxu0 0.0
  %1597 = vmatprep.subr.mxu0 0.0
  %1598 = vmatpush1.msra.mxu0 0.0
  %1599 = vmatprep.subr.mxu0 0.0
  %1600 = vmatpush1.msra.mxu0 0.0
  %1601 = vmatprep.subr.mxu0 0.0
  %1602 = vmatpush1.msra.mxu0 0.0
  %1603 = vmatprep.mubr.f32.mxu0 0.0
  %1604 = vmatmul.mubr.f32.gmra.mrb[0].mxu0 %v1458
  %v1605 = vpop.f32.mrb[0].mxu0
  %v1606 = vadd.f32 0.0, %v1605
  %v1607 = vpop.f32.mrb[0].mxu0
  %v1608 = vadd.f32 0.0, %v1607
  %1609 = vdwg.mxu0
  %v1610 = vadd.f32 %v1464, %v1535
  %v1611 = vadd.f32 %v1465, %v1537
  %v1612 = vadd.f32 %v1466, %v1606
  %v1613 = vadd.f32 %v1467, %v1608
  %v1614 = vmul.f32 %v1610, 0.5
  %v1615 = vtanh.pop %v1614
  %v1616 = vmul.f32 %v1615, 0.5
  %v1617 = vadd.f32 %v1616, 0.5
  %v1618 = vmul.f32 %v1611, 0.5
  %v1619 = vtanh.pop %v1618
  %v1620 = vmul.f32 %v1619, 0.5
  %v1621 = vadd.f32 %v1620, 0.5
  %v1622 = vtanh.pop %v1612
  %v1623 = vmul.f32 %v1613, 0.5
  %v1624 = vtanh.pop %v1623
  %v1625 = vmul.f32 %v1624, 0.5
  %v1626 = vadd.f32 %v1625, 0.5
  %v1627 = vmul.f32 %v1621, %v1456
  %v1628 = vmul.f32 %v1617, %v1622
  %v1629 = vadd.f32 %v1627, %v1628
  %v1630 = vtanh.pop %v1629
  %v1631 = vmul.f32 %v1626, %v1630
  %s1632 = scalar_lea.vmem %s2, 56
  %1633 = vst [vmem:[%s1632] sm:$0xff] %v1631
  %s1634 = scalar_lea.vmem %s3, 56
  %1635 = vst [vmem:[%s1634] sm:$0xff] %v1629
  %1636 = vst [vmem:[#allocation4] sm:$0xff] %v1631
  %1637 = vst [vmem:[#allocation5] sm:$0xff] %v1629
  // Predicated region
  $region44: #{lstm_pallas.1} parent=0 // pred_check
    _
  $region45: #{lstm_pallas.1} parent=0 // pred_check_branch
    %1639 = sbr.rel (0) target = $region47
  $region46: #{lstm_pallas.1} parent=0 // pred_region
    _
  $region47: #{lstm_pallas.1} parent=0 // pred_fallthru
    _
  // Predicated region
  $region48: #{lstm_pallas.1} parent=0 // pred_check
    _
  $region49: #{lstm_pallas.1} parent=0 // pred_check_branch
    %1641 = sbr.rel (0) target = $region51
  $region50: #{lstm_pallas.1} parent=0 // pred_region
    _
  $region51: #{lstm_pallas.1} parent=0 // pred_fallthru
    _
  // Predicated region
  $region52: #{lstm_pallas.1} parent=0 // pred_check
    _
  $region53: #{lstm_pallas.1} parent=0 // pred_check_branch
    %1643 = sbr.rel (0) target = $region55
  $region54: #{lstm_pallas.1} parent=0 // pred_region
    _
  $region55: #{lstm_pallas.1} parent=0 // pred_fallthru
    _
  // Predicated region
  $region56: #{lstm_pallas.1} parent=0 // pred_check
    _
  $region57: #{lstm_pallas.1} parent=0 // pred_check_branch
    %1645 = sbr.rel (0) target = $region59
  $region58: #{lstm_pallas.1} parent=0 // pred_region
    _
  $region59: #{lstm_pallas.1} parent=0 // pred_fallthru
    _
  %1646 = vsyncmov [#allocation3]
  %s1647 = vpop.sfrf %1646
  %p1648 = scmp.eq.s32.totalorder %s1647, 0
  %p1649 = pneg %p1648
  %1651 = shalt.err (%p1649)

</llo_original>
